<compile_context>
chip_gen: v7x
topology: tpu7x:2x2x1
jax: 0.10.0
libtpu: 0.0.40
codegen_flags: <defaults>
</compile_context>

<pallas_src>
import functools

import jax
import jax.numpy as jnp
import numpy as np
from jax import lax
from jax.experimental import pallas as pl
from jax.experimental.pallas import tpu as pltpu


def _upsample_kernel(x_ref, w_ref, b_ref, o_ref, *, C, Wp, LV):
    """One image per grid step.

    x_ref: (1, C, LPAD)  zero-padded image, flattened row-major with row stride
                         Wp = W + 2, plus >= 2*Wp + 2 lanes of zero tail slack
                         (so every shifted view below is in bounds and reads 0).
    w_ref: (12, 2C, C)   packed taps; index = a*6 + u*3 + t, rows = (b, c_out).
    b_ref: (2C, 1)       f32 bias, rows = (b, c_out).
    o_ref: (1, 4C, LV)   lane-dense output slab, rows = (a, b, c_out),
                         lane = i*Wp + j (LV multiple of 128 -> unmasked vst).
    """
    x = x_ref.at[0]                                    # (C, LPAD) ref view

    # Load each of the 9 shifted views exactly once (static lane-offset slices).
    # These feed the MXU directly -- no im2col scratch, no re-store to VMEM.
    rhs = {}
    for s in range(3):
        for t in range(3):
            off = s * Wp + t
            rhs[(s, t)] = x[:, off:off + LV]           # (C, LV)

    bias = b_ref[...]                                  # (2C, 1) f32
    half = 2 * C
    # Two output-row-parity halves; each uses only its 6 contributing taps
    # (24*C^2*LV flops total).  Accumulation stays in f32 vregs.
    for a in range(2):
        acc = None
        for u in range(2):                             # kernel-row tap
            for t in range(3):                         # padded-column shift
                part = jnp.dot(w_ref[a * 6 + u * 3 + t], rhs[(a + u, t)],
                               preferred_element_type=jnp.float32)
                acc = part if acc is None else acc + part
        o_ref[0, a * half:(a + 1) * half, :] = (acc + bias).astype(o_ref.dtype)


def _pack_params(w_pt, bias, op_dtype):
    """Pack ConvTranspose2d(k=4, s=2, p=1) weights into 12 (2C, C) tap blocks.

    Block index = a*6 + u*3 + t; block rows ordered (b, c_out); cols = c_in.
    """
    C = w_pt.shape[0]
    blocks = []
    for a in range(2):
        for u in range(2):
            for t in range(3):
                rows = []
                for b in range(2):
                    v = t - b
                    if 0 <= v <= 1:
                        rows.append(w_pt[:, :, 3 - a - 2 * u, 3 - b - 2 * v].T)
                    else:
                        rows.append(jnp.zeros((C, C), w_pt.dtype))
                blocks.append(jnp.concatenate(rows, axis=0))       # (2C, C)
    w_all = jnp.stack(blocks, axis=0).astype(op_dtype)             # (12, 2C, C)
    b2 = jnp.tile(bias.astype(jnp.float32), 2)[:, None]            # (2C, 1)
    return w_all, b2


def make_upsample(w_pt, bias, *, matmul_dtype=None):
    """Upsample (ConvTranspose2d(C, C, 4, 2, 1)) forward.  Params packed once.

    matmul_dtype: optionally cast MXU operands (e.g. jnp.bfloat16 on v6e/v7x
    for ~2-3x MXU throughput); accumulation is always f32.  Default keeps the
    input dtype so f32 inputs match the f32 reference within 1e-4.
    """
    C = w_pt.shape[0]
    w_dtype = w_pt.dtype if matmul_dtype is None else matmul_dtype
    w_all, b2 = _pack_params(w_pt, bias, w_dtype)   # packed once at init

    def apply(x_nchw):
        N, Cx, H, W = x_nchw.shape
        assert Cx == C
        Wp, Hp = W + 2, H + 2
        LV = ((H * Wp + 127) // 128) * 128      # lane-dense matmul / slab width
        LPAD = 2 * Wp + 2 + LV                  # max view offset + view length
        out_dt = x_nchw.dtype
        op_dt = out_dt if matmul_dtype is None else matmul_dtype

        # One small XLA pad of the *input* replaces the previous in-kernel
        # memset + H misaligned halo-row stores; the zero tail slack guarantees
        # every shifted view in the kernel is in bounds and reads zeros.
        xp = jnp.pad(x_nchw, ((0, 0), (0, 0), (1, 1), (1, 1)))
        xp = xp.reshape(N, C, Hp * Wp)
        xp = jnp.pad(xp, ((0, 0), (0, 0), (0, LPAD - Hp * Wp))).astype(op_dt)

        kernel = functools.partial(_upsample_kernel, C=C, Wp=Wp, LV=LV)
        yk = pl.pallas_call(
            kernel,
            out_shape=jax.ShapeDtypeStruct((N, 4 * C, LV), out_dt),
            grid_spec=pltpu.PrefetchScalarGridSpec(
                num_scalar_prefetch=0,
                # TODO(synk): for N == 1 or large H*W*C, add an H-tile grid axis
                # (input window with a 2-row halo) to bound per-step VMEM on
                # v7x (64 MiB) and to keep both v7x TensorCores busy at batch 1.
                grid=(N,),
                in_specs=[
                    pl.BlockSpec((1, C, LPAD), lambda n: (n, 0, 0)),
                    # TODO(synk): for large C, single-buffer these grid-invariant
                    # blocks (pipeline_mode=pl.Buffered(1)) or load them once
                    # into scratch to avoid double-buffering the packed weights.
                    pl.BlockSpec((12, 2 * C, C), lambda n: (0, 0, 0)),
                    pl.BlockSpec((2 * C, 1), lambda n: (0, 0)),
                ],
                out_specs=pl.BlockSpec((1, 4 * C, LV), lambda n: (n, 0, 0)),
            ),
            compiler_params=pltpu.CompilerParams(
                dimension_semantics=("parallel",),
            ),
        )(xp, w_all, b2)

        # Repack the lane-dense slab (rows = (a, b, c), lane = i*Wp + j) to NCHW.
        # TODO(synk): in a real model, fuse this repack into the consumer (or
        # keep the slab as the public activation layout) to avoid one extra HBM
        # round trip of the output.
        y = yk[:, :, :H * Wp].reshape(N, 2, 2, C, H, Wp)[..., :W]
        return jnp.transpose(y, (0, 3, 4, 1, 5, 2)).reshape(N, C, 2 * H, 2 * W)

    return jax.jit(apply)


def _reference(x_nchw, w_pt, bias):
    # ConvTranspose2d == conv with lhs_dilation=stride, padding=k-1-p, flipped kernel.
    w_flip = jnp.transpose(w_pt, (1, 0, 2, 3))[:, :, ::-1, ::-1]   # (Cout, Cin, kH, kW)
    y = lax.conv_general_dilated(
        x_nchw, w_flip,
        window_strides=(1, 1),
        padding=[(2, 2), (2, 2)],
        lhs_dilation=(2, 2),
        dimension_numbers=('NCHW', 'OIHW', 'NCHW'))
    return y + bias[None, :, None, None]


if __name__ == "__main__":
    key = jax.random.PRNGKey(0)
    kx, kw, kb = jax.random.split(key, 3)

    N, C, H, W = 2, 4, 16, 16
    x = jax.random.normal(kx, (N, C, H, W), dtype=jnp.float32)
    # ConvTranspose2d weight layout: (in_channels, out_channels, kH, kW)
    w_pt = 0.1 * jax.random.normal(kw, (C, C, 4, 4), dtype=jnp.float32)
    bias = 0.1 * jax.random.normal(kb, (C,), dtype=jnp.float32)

    upsample = make_upsample(w_pt, bias)
    y = jax.block_until_ready(upsample(x))

    y_ref = _reference(x, w_pt, bias)
    assert y.shape == (N, C, 2 * H, 2 * W), y.shape
    np.testing.assert_allclose(np.asarray(y), np.asarray(y_ref),
                               rtol=1e-4, atol=1e-4)
    print("KERNEL_OK")
</pallas_src>

<mosaic_0001>
module attributes {stable_mosaic.version = 11 : i64} {
  func.func @_upsample_kernel(%arg0: i32, %arg1: memref<1x4x422xf32, #tpu.memory_space<vmem>>, %arg2: memref<12x8x4xf32, #tpu.memory_space<vmem>>, %arg3: memref<8x1xf32, #tpu.memory_space<vmem>>, %arg4: memref<1x16x384xf32, #tpu.memory_space<vmem>>) attributes {dimension_semantics = [#tpu.dimension_semantics<parallel>], iteration_bounds = array<i64: 2>, scalar_prefetch = 0 : i64, scratch_operands = 0 : i64, tpu.core_type = #tpu.core_type<tc>, window_params = [{transform_indices = @transform_0, window_bounds = array<i64: 1, 4, 422>}, {pipeline_mode = #tpu.pipeline_mode<synchronous>, transform_indices = @transform_1, window_bounds = array<i64: 12, 8, 4>}, {pipeline_mode = #tpu.pipeline_mode<synchronous>, transform_indices = @transform_2, window_bounds = array<i64: 8, 1>}, {transform_indices = @transform_3, window_bounds = array<i64: 1, 16, 384>}]} {
    %c0_i32 = arith.constant 0 : i32
    %c0_i32_0 = arith.constant 0 : i32
    %c0_i32_1 = arith.constant 0 : i32
    %0 = tpu.memref_slice %arg1[%c0_i32, %c0_i32_0, %c0_i32_1] : memref<1x4x422xf32, #tpu.memory_space<vmem>> -> memref<1x4x422xf32, #tpu.memory_space<vmem>>
    %1 = tpu.memref_squeeze %0 : memref<1x4x422xf32, #tpu.memory_space<vmem>> -> memref<4x422xf32, #tpu.memory_space<vmem>>
    %c0 = arith.constant 0 : index
    %c0_2 = arith.constant 0 : index
    %2 = vector.load %1[%c0, %c0_2] : memref<4x422xf32, #tpu.memory_space<vmem>>, vector<4x384xf32>
    %c0_i32_3 = arith.constant 0 : i32
    %c0_i32_4 = arith.constant 0 : i32
    %c0_i32_5 = arith.constant 0 : i32
    %3 = tpu.memref_slice %arg1[%c0_i32_3, %c0_i32_4, %c0_i32_5] : memref<1x4x422xf32, #tpu.memory_space<vmem>> -> memref<1x4x422xf32, #tpu.memory_space<vmem>>
    %4 = tpu.memref_squeeze %3 : memref<1x4x422xf32, #tpu.memory_space<vmem>> -> memref<4x422xf32, #tpu.memory_space<vmem>>
    %c0_6 = arith.constant 0 : index
    %c1 = arith.constant 1 : index
    %5 = vector.load %4[%c0_6, %c1] : memref<4x422xf32, #tpu.memory_space<vmem>>, vector<4x384xf32>
    %c0_i32_7 = arith.constant 0 : i32
    %c0_i32_8 = arith.constant 0 : i32
    %c0_i32_9 = arith.constant 0 : i32
    %6 = tpu.memref_slice %arg1[%c0_i32_7, %c0_i32_8, %c0_i32_9] : memref<1x4x422xf32, #tpu.memory_space<vmem>> -> memref<1x4x422xf32, #tpu.memory_space<vmem>>
    %7 = tpu.memref_squeeze %6 : memref<1x4x422xf32, #tpu.memory_space<vmem>> -> memref<4x422xf32, #tpu.memory_space<vmem>>
    %c0_10 = arith.constant 0 : index
    %c2 = arith.constant 2 : index
    %8 = vector.load %7[%c0_10, %c2] : memref<4x422xf32, #tpu.memory_space<vmem>>, vector<4x384xf32>
    %c0_i32_11 = arith.constant 0 : i32
    %c0_i32_12 = arith.constant 0 : i32
    %c0_i32_13 = arith.constant 0 : i32
    %9 = tpu.memref_slice %arg1[%c0_i32_11, %c0_i32_12, %c0_i32_13] : memref<1x4x422xf32, #tpu.memory_space<vmem>> -> memref<1x4x422xf32, #tpu.memory_space<vmem>>
    %10 = tpu.memref_squeeze %9 : memref<1x4x422xf32, #tpu.memory_space<vmem>> -> memref<4x422xf32, #tpu.memory_space<vmem>>
    %c0_14 = arith.constant 0 : index
    %c18 = arith.constant 18 : index
    %11 = vector.load %10[%c0_14, %c18] : memref<4x422xf32, #tpu.memory_space<vmem>>, vector<4x384xf32>
    %c0_i32_15 = arith.constant 0 : i32
    %c0_i32_16 = arith.constant 0 : i32
    %c0_i32_17 = arith.constant 0 : i32
    %12 = tpu.memref_slice %arg1[%c0_i32_15, %c0_i32_16, %c0_i32_17] : memref<1x4x422xf32, #tpu.memory_space<vmem>> -> memref<1x4x422xf32, #tpu.memory_space<vmem>>
    %13 = tpu.memref_squeeze %12 : memref<1x4x422xf32, #tpu.memory_space<vmem>> -> memref<4x422xf32, #tpu.memory_space<vmem>>
    %c0_18 = arith.constant 0 : index
    %c19 = arith.constant 19 : index
    %14 = vector.load %13[%c0_18, %c19] : memref<4x422xf32, #tpu.memory_space<vmem>>, vector<4x384xf32>
    %c0_i32_19 = arith.constant 0 : i32
    %c0_i32_20 = arith.constant 0 : i32
    %c0_i32_21 = arith.constant 0 : i32
    %15 = tpu.memref_slice %arg1[%c0_i32_19, %c0_i32_20, %c0_i32_21] : memref<1x4x422xf32, #tpu.memory_space<vmem>> -> memref<1x4x422xf32, #tpu.memory_space<vmem>>
    %16 = tpu.memref_squeeze %15 : memref<1x4x422xf32, #tpu.memory_space<vmem>> -> memref<4x422xf32, #tpu.memory_space<vmem>>
    %c0_22 = arith.constant 0 : index
    %c20 = arith.constant 20 : index
    %17 = vector.load %16[%c0_22, %c20] : memref<4x422xf32, #tpu.memory_space<vmem>>, vector<4x384xf32>
    %c0_i32_23 = arith.constant 0 : i32
    %c0_i32_24 = arith.constant 0 : i32
    %c0_i32_25 = arith.constant 0 : i32
    %18 = tpu.memref_slice %arg1[%c0_i32_23, %c0_i32_24, %c0_i32_25] : memref<1x4x422xf32, #tpu.memory_space<vmem>> -> memref<1x4x422xf32, #tpu.memory_space<vmem>>
    %19 = tpu.memref_squeeze %18 : memref<1x4x422xf32, #tpu.memory_space<vmem>> -> memref<4x422xf32, #tpu.memory_space<vmem>>
    %c0_26 = arith.constant 0 : index
    %c36 = arith.constant 36 : index
    %20 = vector.load %19[%c0_26, %c36] : memref<4x422xf32, #tpu.memory_space<vmem>>, vector<4x384xf32>
    %c0_i32_27 = arith.constant 0 : i32
    %c0_i32_28 = arith.constant 0 : i32
    %c0_i32_29 = arith.constant 0 : i32
    %21 = tpu.memref_slice %arg1[%c0_i32_27, %c0_i32_28, %c0_i32_29] : memref<1x4x422xf32, #tpu.memory_space<vmem>> -> memref<1x4x422xf32, #tpu.memory_space<vmem>>
    %22 = tpu.memref_squeeze %21 : memref<1x4x422xf32, #tpu.memory_space<vmem>> -> memref<4x422xf32, #tpu.memory_space<vmem>>
    %c0_30 = arith.constant 0 : index
    %c37 = arith.constant 37 : index
    %23 = vector.load %22[%c0_30, %c37] : memref<4x422xf32, #tpu.memory_space<vmem>>, vector<4x384xf32>
    %c0_i32_31 = arith.constant 0 : i32
    %c0_i32_32 = arith.constant 0 : i32
    %c0_i32_33 = arith.constant 0 : i32
    %24 = tpu.memref_slice %arg1[%c0_i32_31, %c0_i32_32, %c0_i32_33] : memref<1x4x422xf32, #tpu.memory_space<vmem>> -> memref<1x4x422xf32, #tpu.memory_space<vmem>>
    %25 = tpu.memref_squeeze %24 : memref<1x4x422xf32, #tpu.memory_space<vmem>> -> memref<4x422xf32, #tpu.memory_space<vmem>>
    %c0_34 = arith.constant 0 : index
    %c38 = arith.constant 38 : index
    %26 = vector.load %25[%c0_34, %c38] : memref<4x422xf32, #tpu.memory_space<vmem>>, vector<4x384xf32>
    %c0_35 = arith.constant 0 : index
    %c0_36 = arith.constant 0 : index
    %27 = vector.load %arg3[%c0_35, %c0_36] : memref<8x1xf32, #tpu.memory_space<vmem>>, vector<8x1xf32>
    %c0_37 = arith.constant 0 : index
    %c0_38 = arith.constant 0 : index
    %c0_39 = arith.constant 0 : index
    %28 = vector.load %arg2[%c0_37, %c0_38, %c0_39] : memref<12x8x4xf32, #tpu.memory_space<vmem>>, vector<1x8x4xf32>
    %29 = vector.shape_cast %28 : vector<1x8x4xf32> to vector<8x4xf32>
    %cst = arith.constant dense<0.000000e+00> : vector<8x384xf32>
    %30 = tpu.matmul %29, %2, %cst {dimension_numbers = #tpu.dot_dimension_numbers<[1], [0], [0], [1], [0, 0, 1, 1], [], []>} : vector<8x4xf32>, vector<4x384xf32>, vector<8x384xf32> -> vector<8x384xf32>
    %c1_40 = arith.constant 1 : index
    %c0_41 = arith.constant 0 : index
    %c0_42 = arith.constant 0 : index
    %31 = vector.load %arg2[%c1_40, %c0_41, %c0_42] : memref<12x8x4xf32, #tpu.memory_space<vmem>>, vector<1x8x4xf32>
    %32 = vector.shape_cast %31 : vector<1x8x4xf32> to vector<8x4xf32>
    %cst_43 = arith.constant dense<0.000000e+00> : vector<8x384xf32>
    %33 = tpu.matmul %32, %5, %cst_43 {dimension_numbers = #tpu.dot_dimension_numbers<[1], [0], [0], [1], [0, 0, 1, 1], [], []>} : vector<8x4xf32>, vector<4x384xf32>, vector<8x384xf32> -> vector<8x384xf32>
    %34 = arith.addf %30, %33 : vector<8x384xf32>
    %c2_44 = arith.constant 2 : index
    %c0_45 = arith.constant 0 : index
    %c0_46 = arith.constant 0 : index
    %35 = vector.load %arg2[%c2_44, %c0_45, %c0_46] : memref<12x8x4xf32, #tpu.memory_space<vmem>>, vector<1x8x4xf32>
    %36 = vector.shape_cast %35 : vector<1x8x4xf32> to vector<8x4xf32>
    %cst_47 = arith.constant dense<0.000000e+00> : vector<8x384xf32>
    %37 = tpu.matmul %36, %8, %cst_47 {dimension_numbers = #tpu.dot_dimension_numbers<[1], [0], [0], [1], [0, 0, 1, 1], [], []>} : vector<8x4xf32>, vector<4x384xf32>, vector<8x384xf32> -> vector<8x384xf32>
    %38 = arith.addf %34, %37 : vector<8x384xf32>
    %c3 = arith.constant 3 : index
    %c0_48 = arith.constant 0 : index
    %c0_49 = arith.constant 0 : index
    %39 = vector.load %arg2[%c3, %c0_48, %c0_49] : memref<12x8x4xf32, #tpu.memory_space<vmem>>, vector<1x8x4xf32>
    %40 = vector.shape_cast %39 : vector<1x8x4xf32> to vector<8x4xf32>
    %cst_50 = arith.constant dense<0.000000e+00> : vector<8x384xf32>
    %41 = tpu.matmul %40, %11, %cst_50 {dimension_numbers = #tpu.dot_dimension_numbers<[1], [0], [0], [1], [0, 0, 1, 1], [], []>} : vector<8x4xf32>, vector<4x384xf32>, vector<8x384xf32> -> vector<8x384xf32>
    %42 = arith.addf %38, %41 : vector<8x384xf32>
    %c4 = arith.constant 4 : index
    %c0_51 = arith.constant 0 : index
    %c0_52 = arith.constant 0 : index
    %43 = vector.load %arg2[%c4, %c0_51, %c0_52] : memref<12x8x4xf32, #tpu.memory_space<vmem>>, vector<1x8x4xf32>
    %44 = vector.shape_cast %43 : vector<1x8x4xf32> to vector<8x4xf32>
    %cst_53 = arith.constant dense<0.000000e+00> : vector<8x384xf32>
    %45 = tpu.matmul %44, %14, %cst_53 {dimension_numbers = #tpu.dot_dimension_numbers<[1], [0], [0], [1], [0, 0, 1, 1], [], []>} : vector<8x4xf32>, vector<4x384xf32>, vector<8x384xf32> -> vector<8x384xf32>
    %46 = arith.addf %42, %45 : vector<8x384xf32>
    %c5 = arith.constant 5 : index
    %c0_54 = arith.constant 0 : index
    %c0_55 = arith.constant 0 : index
    %47 = vector.load %arg2[%c5, %c0_54, %c0_55] : memref<12x8x4xf32, #tpu.memory_space<vmem>>, vector<1x8x4xf32>
    %48 = vector.shape_cast %47 : vector<1x8x4xf32> to vector<8x4xf32>
    %cst_56 = arith.constant dense<0.000000e+00> : vector<8x384xf32>
    %49 = tpu.matmul %48, %17, %cst_56 {dimension_numbers = #tpu.dot_dimension_numbers<[1], [0], [0], [1], [0, 0, 1, 1], [], []>} : vector<8x4xf32>, vector<4x384xf32>, vector<8x384xf32> -> vector<8x384xf32>
    %50 = arith.addf %46, %49 : vector<8x384xf32>
    %51 = vector.broadcast %27 : vector<8x1xf32> to vector<8x384xf32>
    %52 = arith.addf %50, %51 : vector<8x384xf32>
    %c0_57 = arith.constant 0 : index
    %c0_58 = arith.constant 0 : index
    %c0_59 = arith.constant 0 : index
    %53 = vector.load %arg4[%c0_57, %c0_58, %c0_59] : memref<1x16x384xf32, #tpu.memory_space<vmem>>, vector<1x8x384xf32>
    %54 = vector.shape_cast %53 : vector<1x8x384xf32> to vector<8x384xf32>
    %55 = vector.shape_cast %52 : vector<8x384xf32> to vector<1x8x384xf32>
    tpu.vector_store %arg4[%c0_57, %c0_58, %c0_59], %55 {strides = array<i32>} : memref<1x16x384xf32, #tpu.memory_space<vmem>>, vector<1x8x384xf32>,
    %c6 = arith.constant 6 : index
    %c0_60 = arith.constant 0 : index
    %c0_61 = arith.constant 0 : index
    %56 = vector.load %arg2[%c6, %c0_60, %c0_61] : memref<12x8x4xf32, #tpu.memory_space<vmem>>, vector<1x8x4xf32>
    %57 = vector.shape_cast %56 : vector<1x8x4xf32> to vector<8x4xf32>
    %cst_62 = arith.constant dense<0.000000e+00> : vector<8x384xf32>
    %58 = tpu.matmul %57, %11, %cst_62 {dimension_numbers = #tpu.dot_dimension_numbers<[1], [0], [0], [1], [0, 0, 1, 1], [], []>} : vector<8x4xf32>, vector<4x384xf32>, vector<8x384xf32> -> vector<8x384xf32>
    %c7 = arith.constant 7 : index
    %c0_63 = arith.constant 0 : index
    %c0_64 = arith.constant 0 : index
    %59 = vector.load %arg2[%c7, %c0_63, %c0_64] : memref<12x8x4xf32, #tpu.memory_space<vmem>>, vector<1x8x4xf32>
    %60 = vector.shape_cast %59 : vector<1x8x4xf32> to vector<8x4xf32>
    %cst_65 = arith.constant dense<0.000000e+00> : vector<8x384xf32>
    %61 = tpu.matmul %60, %14, %cst_65 {dimension_numbers = #tpu.dot_dimension_numbers<[1], [0], [0], [1], [0, 0, 1, 1], [], []>} : vector<8x4xf32>, vector<4x384xf32>, vector<8x384xf32> -> vector<8x384xf32>
    %62 = arith.addf %58, %61 : vector<8x384xf32>
    %c8 = arith.constant 8 : index
    %c0_66 = arith.constant 0 : index
    %c0_67 = arith.constant 0 : index
    %63 = vector.load %arg2[%c8, %c0_66, %c0_67] : memref<12x8x4xf32, #tpu.memory_space<vmem>>, vector<1x8x4xf32>
    %64 = vector.shape_cast %63 : vector<1x8x4xf32> to vector<8x4xf32>
    %cst_68 = arith.constant dense<0.000000e+00> : vector<8x384xf32>
    %65 = tpu.matmul %64, %17, %cst_68 {dimension_numbers = #tpu.dot_dimension_numbers<[1], [0], [0], [1], [0, 0, 1, 1], [], []>} : vector<8x4xf32>, vector<4x384xf32>, vector<8x384xf32> -> vector<8x384xf32>
    %66 = arith.addf %62, %65 : vector<8x384xf32>
    %c9 = arith.constant 9 : index
    %c0_69 = arith.constant 0 : index
    %c0_70 = arith.constant 0 : index
    %67 = vector.load %arg2[%c9, %c0_69, %c0_70] : memref<12x8x4xf32, #tpu.memory_space<vmem>>, vector<1x8x4xf32>
    %68 = vector.shape_cast %67 : vector<1x8x4xf32> to vector<8x4xf32>
    %cst_71 = arith.constant dense<0.000000e+00> : vector<8x384xf32>
    %69 = tpu.matmul %68, %20, %cst_71 {dimension_numbers = #tpu.dot_dimension_numbers<[1], [0], [0], [1], [0, 0, 1, 1], [], []>} : vector<8x4xf32>, vector<4x384xf32>, vector<8x384xf32> -> vector<8x384xf32>
    %70 = arith.addf %66, %69 : vector<8x384xf32>
    %c10 = arith.constant 10 : index
    %c0_72 = arith.constant 0 : index
    %c0_73 = arith.constant 0 : index
    %71 = vector.load %arg2[%c10, %c0_72, %c0_73] : memref<12x8x4xf32, #tpu.memory_space<vmem>>, vector<1x8x4xf32>
    %72 = vector.shape_cast %71 : vector<1x8x4xf32> to vector<8x4xf32>
    %cst_74 = arith.constant dense<0.000000e+00> : vector<8x384xf32>
    %73 = tpu.matmul %72, %23, %cst_74 {dimension_numbers = #tpu.dot_dimension_numbers<[1], [0], [0], [1], [0, 0, 1, 1], [], []>} : vector<8x4xf32>, vector<4x384xf32>, vector<8x384xf32> -> vector<8x384xf32>
    %74 = arith.addf %70, %73 : vector<8x384xf32>
    %c11 = arith.constant 11 : index
    %c0_75 = arith.constant 0 : index
    %c0_76 = arith.constant 0 : index
    %75 = vector.load %arg2[%c11, %c0_75, %c0_76] : memref<12x8x4xf32, #tpu.memory_space<vmem>>, vector<1x8x4xf32>
    %76 = vector.shape_cast %75 : vector<1x8x4xf32> to vector<8x4xf32>
    %cst_77 = arith.constant dense<0.000000e+00> : vector<8x384xf32>
    %77 = tpu.matmul %76, %26, %cst_77 {dimension_numbers = #tpu.dot_dimension_numbers<[1], [0], [0], [1], [0, 0, 1, 1], [], []>} : vector<8x4xf32>, vector<4x384xf32>, vector<8x384xf32> -> vector<8x384xf32>
    %78 = arith.addf %74, %77 : vector<8x384xf32>
    %79 = vector.broadcast %27 : vector<8x1xf32> to vector<8x384xf32>
    %80 = arith.addf %78, %79 : vector<8x384xf32>
    %c0_78 = arith.constant 0 : index
    %c8_79 = arith.constant 8 : index
    %c0_80 = arith.constant 0 : index
    %81 = vector.load %arg4[%c0_78, %c8_79, %c0_80] : memref<1x16x384xf32, #tpu.memory_space<vmem>>, vector<1x8x384xf32>
    %82 = vector.shape_cast %81 : vector<1x8x384xf32> to vector<8x384xf32>
    %83 = vector.shape_cast %80 : vector<8x384xf32> to vector<1x8x384xf32>
    tpu.vector_store %arg4[%c0_78, %c8_79, %c0_80], %83 {strides = array<i32>} : memref<1x16x384xf32, #tpu.memory_space<vmem>>, vector<1x8x384xf32>,
    return
  }
  func.func @transform_0(%arg0: i32) -> (i32, i32, i32) {
    %c0_i32 = arith.constant 0 : i32
    %c0_i32_0 = arith.constant 0 : i32
    %c0_i32_1 = arith.constant 0 : i32
    return %arg0, %c0_i32, %c0_i32_0 : i32, i32, i32
  }
  func.func @transform_1(%arg0: i32) -> (i32, i32, i32) {
    %c0_i32 = arith.constant 0 : i32
    %c0_i32_0 = arith.constant 0 : i32
    %c0_i32_1 = arith.constant 0 : i32
    %c0_i32_2 = arith.constant 0 : i32
    return %c0_i32, %c0_i32_0, %c0_i32_1 : i32, i32, i32
  }
  func.func @transform_2(%arg0: i32) -> (i32, i32) {
    %c0_i32 = arith.constant 0 : i32
    %c0_i32_0 = arith.constant 0 : i32
    %c0_i32_1 = arith.constant 0 : i32
    return %c0_i32, %c0_i32_0 : i32, i32
  }
  func.func @transform_3(%arg0: i32) -> (i32, i32, i32) {
    %c0_i32 = arith.constant 0 : i32
    %c0_i32_0 = arith.constant 0 : i32
    %c0_i32_1 = arith.constant 0 : i32
    return %arg0, %c0_i32, %c0_i32_0 : i32, i32, i32
  }
}

</mosaic_0001>

<llo_original>
// kernel: apply.1
$region0: #{apply.1}
  #allocation0 [shape = 'u32[]', space=smem, size = 0x4, offset = 0x4, fixed_abs, tag = 'smem constant byte address 0x4 - core index']
  #allocation1 [shape = 'u32[144,128]{1,0:T(1,128)}', space=vmem, size = 0x12000, scoped, tag = 'internal scratch']
  %s0 = inlined_call_operand.vmem [shape: f32[2,4,422], index: 0, kind: input, shape index: {}]
  %s1 = inlined_call_operand.vmem [shape: f32[12,8,4], index: 1, kind: input, shape index: {}]
  %s2 = inlined_call_operand.vmem [shape: f32[8,1], index: 2, kind: input, shape index: {}]
  %s3 = inlined_call_operand.vmem [shape: f32[2,16,384], index: 3, kind: output, shape index: {}]
  %s4 = sld [smem:[#allocation0]]
  $region45: #{apply.1} parent=0
    _
  %s6 = ssub.s32 1, %s4
  %s7 = scalar_select 0, %s6, %s4
  loop: start=0, step=1, limit=4
  $region2: #{apply.1} parent=0 // loop_pre_header
    _
  $region3: #{apply.1} parent=0 // loop_header
    %s9 = sphi 0, %s13
    %p10 = scmp.ge.s32.totalorder %s9, 4
    %s19 = sphi 0, %s21
    %s22 = sphi 0, %s19
    %s23 = sphi 0, %s22
    %s39 = sphi 0, %s23
    %s43 = sphi 0, %s43
    %s45 = sphi 0, %s43
    %s46 = sphi 0, %s45
    %s60 = sphi 0, %s46
    %s64 = sphi 0, %s64
    %s66 = sphi 0, %s64
    %s67 = sphi 0, %s66
    %s81 = sphi 0, %s67
    %s87 = sphi 0, %s89
    %s90 = sphi 0, %s87
    %s91 = sphi 0, %s90
    %s107 = sphi 0, %s91
  $region4: #{apply.1} parent=0 // loop_header_branch
    %12 = sbr.rel (%p10) target = $region8
  $region5: #{apply.1} parent=0 // loop_body
    %s14 = ssub.s32 %s9, 1
    %s15 = ssub.s32 %s9, 2
    %s16 = sadd.s32 %s9, 1
    %s17 = ssub.s32 %s9, %s16
    %p18 = scmp.eq.s32.totalorder %s17, 0
    %s20 = sadd.s32 %s19, 1
    %s21 = scalar_select %p18, %s19, %s20
    %p24 = pneg %p18
    %p25 = scmp.eq.s32.totalorder %s9, 1
    %p26 = por %p24, %p25
    %p27 = scmp.ne.s32.totalorder %s19, %s22
    %p28 = scmp.eq.s32.totalorder %s9, 0
    %p29 = por %p27, %p28
    %p30 = scmp.ne.s32.totalorder %s19, %s22
    %p31 = scmp.eq.s32.totalorder %s14, 1
    %p32 = por %p30, %p31
    %p33 = scmp.ne.s32.totalorder %s22, %s23
    %p34 = scmp.eq.s32.totalorder %s14, 0
    %p35 = por %p33, %p34
    %p36 = scmp.ne.s32.totalorder %s22, %s23
    %p37 = scmp.eq.s32.totalorder %s15, 1
    %p38 = por %p36, %p37
    %p40 = scmp.ne.s32.totalorder %s23, %s39
    %p41 = scmp.eq.s32.totalorder %s15, 0
    %p42 = por %p40, %p41
    %s44 = sadd.s32 %s43, 1
    %p47 = scmp.eq.s32.totalorder %s9, 1
    %p48 = scmp.ne.s32.totalorder %s43, %s45
    %p49 = scmp.eq.s32.totalorder %s9, 0
    %p50 = por %p48, %p49
    %p51 = scmp.ne.s32.totalorder %s43, %s45
    %p52 = scmp.eq.s32.totalorder %s14, 1
    %p53 = por %p51, %p52
    %p54 = scmp.ne.s32.totalorder %s45, %s46
    %p55 = scmp.eq.s32.totalorder %s14, 0
    %p56 = por %p54, %p55
    %p57 = scmp.ne.s32.totalorder %s45, %s46
    %p58 = scmp.eq.s32.totalorder %s15, 1
    %p59 = por %p57, %p58
    %p61 = scmp.ne.s32.totalorder %s46, %s60
    %p62 = scmp.eq.s32.totalorder %s15, 0
    %p63 = por %p61, %p62
    %s65 = sadd.s32 %s64, 1
    %p68 = scmp.eq.s32.totalorder %s9, 1
    %p69 = scmp.ne.s32.totalorder %s64, %s66
    %p70 = scmp.eq.s32.totalorder %s9, 0
    %p71 = por %p69, %p70
    %p72 = scmp.ne.s32.totalorder %s64, %s66
    %p73 = scmp.eq.s32.totalorder %s14, 1
    %p74 = por %p72, %p73
    %p75 = scmp.ne.s32.totalorder %s66, %s67
    %p76 = scmp.eq.s32.totalorder %s14, 0
    %p77 = por %p75, %p76
    %p78 = scmp.ne.s32.totalorder %s66, %s67
    %p79 = scmp.eq.s32.totalorder %s15, 1
    %p80 = por %p78, %p79
    %p82 = scmp.ne.s32.totalorder %s67, %s81
    %p83 = scmp.eq.s32.totalorder %s15, 0
    %p84 = por %p82, %p83
    %s85 = ssub.s32 %s9, %s16
    %p86 = scmp.eq.s32.totalorder %s85, 0
    %s88 = sadd.s32 %s87, 1
    %s89 = scalar_select %p86, %s87, %s88
    %p92 = pneg %p86
    %p93 = scmp.eq.s32.totalorder %s9, 1
    %p94 = por %p92, %p93
    %p95 = scmp.ne.s32.totalorder %s87, %s90
    %p96 = scmp.eq.s32.totalorder %s9, 0
    %p97 = por %p95, %p96
    %p98 = scmp.ne.s32.totalorder %s87, %s90
    %p99 = scmp.eq.s32.totalorder %s14, 1
    %p100 = por %p98, %p99
    %p101 = scmp.ne.s32.totalorder %s90, %s91
    %p102 = scmp.eq.s32.totalorder %s14, 0
    %p103 = por %p101, %p102
    %p104 = scmp.ne.s32.totalorder %s90, %s91
    %p105 = scmp.eq.s32.totalorder %s15, 1
    %p106 = por %p104, %p105
    %p108 = scmp.ne.s32.totalorder %s91, %s107
    %p109 = scmp.eq.s32.totalorder %s15, 0
    %p110 = por %p108, %p109
    %p111 = scmp.le.s32.totalorder 1, %s9
    %p112 = scmp.lt.s32.totalorder %s9, 3
    %p113 = pnand %p111, %p112
    %p114 = pneg %p113
    // Predicated region
    $region9: #{apply.1} parent=5 // pred_check
      _
    $region10: #{apply.1} parent=5 // pred_check_branch
      %116 = sbr.rel (%p113) target = $region12
    $region11: #{apply.1} parent=5 // pred_region
      %s117 = ssub.s32 %s9, 1
      // Predicated region
      $region13: #{apply.1} parent=11 // pred_check
        %p118 = pneg %p56
      $region14: #{apply.1} parent=11 // pred_check_branch
        %120 = sbr.rel (%p118) target = $region16
      $region15: #{apply.1} parent=11 // pred_region
        _
      $region16: #{apply.1} parent=11 // pred_fallthru
        _
      // Predicated region
      $region17: #{apply.1} parent=11 // pred_check
        %p121 = pneg %p77
      $region18: #{apply.1} parent=11 // pred_check_branch
        %123 = sbr.rel (%p121) target = $region20
      $region19: #{apply.1} parent=11 // pred_region
        _
      $region20: #{apply.1} parent=11 // pred_fallthru
        _
    $region12: #{apply.1} parent=5 // pred_fallthru
      _
    %p124 = scmp.lt.s32.totalorder %s9, 2
    // Predicated region
    $region21: #{apply.1} parent=5 // pred_check
      %p125 = pneg %p124
    $region22: #{apply.1} parent=5 // pred_check_branch
      %127 = sbr.rel (%p125) target = $region24
    $region23: #{apply.1} parent=5 // pred_region
      // Predicated region
      $region25: #{apply.1} parent=23 // pred_check
        %p128 = pneg %p29
      $region26: #{apply.1} parent=23 // pred_check_branch
        %130 = sbr.rel (%p128) target = $region28
      $region27: #{apply.1} parent=23 // pred_region
        %p131 = scmp.lt.s32.totalorder %s9, 1
        %s132 = scalar_select %p131, %s9, 1
        %s133 = smul.addr %s132, 4
        %s134 = smul.addr %s133, 4
        %s135 = scalar_lea.vmem %s0, %s134
      $region28: #{apply.1} parent=23 // pred_fallthru
        _
    $region24: #{apply.1} parent=5 // pred_fallthru
      _
    %p136 = scmp.le.s32.totalorder 1, %s9
    %p137 = scmp.lt.s32.totalorder %s9, 3
    %p138 = pnand %p136, %p137
    %p139 = pneg %p138
    // Predicated region
    $region29: #{apply.1} parent=5 // pred_check
      _
    $region30: #{apply.1} parent=5 // pred_check_branch
      %141 = sbr.rel (%p138) target = $region32
    $region31: #{apply.1} parent=5 // pred_region
      %s142 = ssub.s32 %s9, 1
      %p143 = scmp.lt.s32.totalorder %s14, 1
      %s144 = scalar_select %p143, %s14, 1
      %s145 = smul.addr %s144, 4
      %s146 = smul.addr %s145, 4
      %s147 = scalar_lea.vmem %s0, %s146
      %p148 = pneg %p35
      %p149 = pneg %p32
      %p150 = pneg %p56
      %p151 = pneg %p53
      %p152 = pneg %p77
      %p153 = pneg %p74
      %p154 = pneg %p103
      %p155 = pneg %p100
      %p156 = scmp.lt.s32.totalorder %s14, 1
      %s157 = scalar_select %p156, %s14, 1
      %s158 = smul.addr %s157, 6
      %s159 = smul.addr %s158, 8
      %s160 = scalar_lea.vmem %s3, %s159
      %p161 = scmp.lt.s32.totalorder %s14, 1
      %s162 = scalar_select %p161, %s14, 1
      %s163 = smul.addr %s162, 4
      %s164 = smul.addr %s163, 4
      %s165 = scalar_lea.vmem %s0, %s164
      %p166 = scmp.lt.s32.totalorder %s14, 1
      %s167 = scalar_select %p166, %s14, 1
      %s168 = smul.addr %s167, 6
      %s169 = smul.addr %s168, 8
      %s170 = scalar_lea.vmem %s3, %s169
      %v171 = vld [vmem:[%s165] sm:$0xff]
      %v172 = vld [vmem:[%s165 + $0x8] sm:$0xf]
      %v173 = vld [vmem:[%s165 + $0x8] sm:$0xff]
      %v174 = vld [vmem:[%s2] sm:$0xff]
      %v175 = vld [vmem:[%s1] sm:$0xff]
      %s176 = scalar_lea.vmem %s1, 8
      %v177 = vld [vmem:[%s176] sm:$0xff]
      %v180 = vcombine.high %v171, %v171
      %v181 = vcombine.high %v173, %v173
      %182 = vrot.lane.b32.xlu0 %v171, 127
      %v183 = vpop.permute.xlu0 %182
      %184 = vrot.lane.b32.xlu0 %v180, 127
      %v185 = vpop.permute.xlu0 %184
      %186 = vrot.lane.b32.xlu0 %v173, 127
      %v187 = vpop.permute.xlu0 %186
      %188 = vrot.lane.b32.xlu0 %v181, 127
      %v189 = vpop.permute.xlu0 %188
      %vm190 = vcmask 1039360
      %v191 = vsel %vm190, %v183, %v185
      %v192 = vsel %vm190, %v185, %v187
      %v193 = vsel %vm190, %v187, %v189
      %vm194 = vcmask 31744
      %v196 = vsel %vm194, %v177, 0
      %vm198 = vcmask 1043456
      %v199 = vsel %vm198, %v191, 0
      %v201 = vsel %vm198, %v192, 0
      %v203 = vsel %vm198, %v193, 0
      %205 = vmatprep.subr.mxu0 %v201
      %206 = vmatpush1.msra.mxu0 %v199
      %207 = vmatprep.subr.mxu0 0.0
      %208 = vmatpush1.msra.mxu0 0.0
      %209 = vmatprep.subr.mxu0 0.0
      %210 = vmatpush1.msra.mxu0 0.0
      %211 = vmatprep.subr.mxu0 0.0
      %212 = vmatpush1.msra.mxu0 0.0
      %213 = vmatprep.subr.mxu0 0.0
      %214 = vmatpush1.msra.mxu0 0.0
      %215 = vmatprep.subr.mxu0 0.0
      %216 = vmatpush1.msra.mxu0 0.0
      %217 = vmatprep.subr.mxu0 0.0
      %218 = vmatpush1.msra.mxu0 0.0
      %219 = vmatprep.subr.mxu0 0.0
      %220 = vmatpush1.msra.mxu0 0.0
      %221 = vmatprep.subr.mxu0 0.0
      %222 = vmatpush1.msra.mxu0 0.0
      %223 = vmatprep.subr.mxu0 0.0
      %224 = vmatpush1.msra.mxu0 0.0
      %225 = vmatprep.subr.mxu0 0.0
      %226 = vmatpush1.msra.mxu0 0.0
      %227 = vmatprep.subr.mxu0 0.0
      %228 = vmatpush1.msra.mxu0 0.0
      %229 = vmatprep.subr.mxu0 0.0
      %230 = vmatpush1.msra.mxu0 0.0
      %231 = vmatprep.subr.mxu0 0.0
      %232 = vmatpush1.msra.mxu0 0.0
      %233 = vmatprep.subr.mxu0 0.0
      %234 = vmatpush1.msra.mxu0 0.0
      %235 = vmatprep.subr.mxu0 0.0
      %236 = vmatpush1.msra.mxu0 0.0
      %237 = vmatprep.subr.mxu0 0.0
      %238 = vmatpush1.msra.mxu0 0.0
      %239 = vmatprep.subr.mxu0 0.0
      %240 = vmatpush1.msra.mxu0 0.0
      %241 = vmatprep.subr.mxu0 0.0
      %242 = vmatpush1.msra.mxu0 0.0
      %243 = vmatprep.subr.mxu0 0.0
      %244 = vmatpush1.msra.mxu0 0.0
      %245 = vmatprep.subr.mxu0 0.0
      %246 = vmatpush1.msra.mxu0 0.0
      %247 = vmatprep.subr.mxu0 0.0
      %248 = vmatpush1.msra.mxu0 0.0
      %249 = vmatprep.subr.mxu0 0.0
      %250 = vmatpush1.msra.mxu0 0.0
      %251 = vmatprep.subr.mxu0 0.0
      %252 = vmatpush1.msra.mxu0 0.0
      %253 = vmatprep.subr.mxu0 0.0
      %254 = vmatpush1.msra.mxu0 0.0
      %255 = vmatprep.subr.mxu0 0.0
      %256 = vmatpush1.msra.mxu0 0.0
      %257 = vmatprep.subr.mxu0 0.0
      %258 = vmatpush1.msra.mxu0 0.0
      %259 = vmatprep.subr.mxu0 0.0
      %260 = vmatpush1.msra.mxu0 0.0
      %261 = vmatprep.subr.mxu0 0.0
      %262 = vmatpush1.msra.mxu0 0.0
      %263 = vmatprep.subr.mxu0 0.0
      %264 = vmatpush1.msra.mxu0 0.0
      %265 = vmatprep.subr.mxu0 0.0
      %266 = vmatpush1.msra.mxu0 0.0
      %267 = vmatprep.subr.mxu0 0.0
      %268 = vmatpush1.msra.mxu0 0.0
      %269 = vmatprep.mubr.f32.mxu0 0.0
      %270 = vmatmul.mubr.f32.gmra.mrb[0].mxu0 %v196
      %v271 = vpop.f32.mrb[0].mxu0
      %v272 = vadd.f32 0.0, %v271
      %v273 = vpop.f32.mrb[0].mxu0
      %v274 = vadd.f32 0.0, %v273
      %275 = vdwg.mxu0
      %276 = vmatprep.subr.mxu0 0.0
      %277 = vmatpush1.msra.mxu0 %v203
      %278 = vmatprep.subr.mxu0 0.0
      %279 = vmatpush1.msra.mxu0 0.0
      %280 = vmatprep.subr.mxu0 0.0
      %281 = vmatpush1.msra.mxu0 0.0
      %282 = vmatprep.subr.mxu0 0.0
      %283 = vmatpush1.msra.mxu0 0.0
      %284 = vmatprep.subr.mxu0 0.0
      %285 = vmatpush1.msra.mxu0 0.0
      %286 = vmatprep.subr.mxu0 0.0
      %287 = vmatpush1.msra.mxu0 0.0
      %288 = vmatprep.subr.mxu0 0.0
      %289 = vmatpush1.msra.mxu0 0.0
      %290 = vmatprep.subr.mxu0 0.0
      %291 = vmatpush1.msra.mxu0 0.0
      %292 = vmatprep.subr.mxu0 0.0
      %293 = vmatpush1.msra.mxu0 0.0
      %294 = vmatprep.subr.mxu0 0.0
      %295 = vmatpush1.msra.mxu0 0.0
      %296 = vmatprep.subr.mxu0 0.0
      %297 = vmatpush1.msra.mxu0 0.0
      %298 = vmatprep.subr.mxu0 0.0
      %299 = vmatpush1.msra.mxu0 0.0
      %300 = vmatprep.subr.mxu0 0.0
      %301 = vmatpush1.msra.mxu0 0.0
      %302 = vmatprep.subr.mxu0 0.0
      %303 = vmatpush1.msra.mxu0 0.0
      %304 = vmatprep.subr.mxu0 0.0
      %305 = vmatpush1.msra.mxu0 0.0
      %306 = vmatprep.subr.mxu0 0.0
      %307 = vmatpush1.msra.mxu0 0.0
      %308 = vmatprep.subr.mxu0 0.0
      %309 = vmatpush1.msra.mxu0 0.0
      %310 = vmatprep.subr.mxu0 0.0
      %311 = vmatpush1.msra.mxu0 0.0
      %312 = vmatprep.subr.mxu0 0.0
      %313 = vmatpush1.msra.mxu0 0.0
      %314 = vmatprep.subr.mxu0 0.0
      %315 = vmatpush1.msra.mxu0 0.0
      %316 = vmatprep.subr.mxu0 0.0
      %317 = vmatpush1.msra.mxu0 0.0
      %318 = vmatprep.subr.mxu0 0.0
      %319 = vmatpush1.msra.mxu0 0.0
      %320 = vmatprep.subr.mxu0 0.0
      %321 = vmatpush1.msra.mxu0 0.0
      %322 = vmatprep.subr.mxu0 0.0
      %323 = vmatpush1.msra.mxu0 0.0
      %324 = vmatprep.subr.mxu0 0.0
      %325 = vmatpush1.msra.mxu0 0.0
      %326 = vmatprep.subr.mxu0 0.0
      %327 = vmatpush1.msra.mxu0 0.0
      %328 = vmatprep.subr.mxu0 0.0
      %329 = vmatpush1.msra.mxu0 0.0
      %330 = vmatprep.subr.mxu0 0.0
      %331 = vmatpush1.msra.mxu0 0.0
      %332 = vmatprep.subr.mxu0 0.0
      %333 = vmatpush1.msra.mxu0 0.0
      %334 = vmatprep.subr.mxu0 0.0
      %335 = vmatpush1.msra.mxu0 0.0
      %336 = vmatprep.subr.mxu0 0.0
      %337 = vmatpush1.msra.mxu0 0.0
      %338 = vmatprep.subr.mxu0 0.0
      %339 = vmatpush1.msra.mxu0 0.0
      %340 = vmatprep.mubr.f32.mxu0 0.0
      %341 = vmatmul.mubr.f32.gmra.mrb[0].mxu0 %v196
      %v342 = vpop.f32.mrb[0].mxu0
      %v343 = vadd.f32 0.0, %v342
      %v344 = vpop.f32.mrb[0].mxu0
      %345 = vdwg.mxu0
      %v348 = vsel %vm194, %v175, 0
      %v350 = vsel %vm198, %v171, 0
      %v352 = vsel %vm198, %v180, 0
      %v354 = vsel %vm198, %v172, 0
      %356 = vmatprep.subr.mxu0 %v352
      %357 = vmatpush1.msra.mxu0 %v350
      %358 = vmatprep.subr.mxu0 0.0
      %359 = vmatpush1.msra.mxu0 0.0
      %360 = vmatprep.subr.mxu0 0.0
      %361 = vmatpush1.msra.mxu0 0.0
      %362 = vmatprep.subr.mxu0 0.0
      %363 = vmatpush1.msra.mxu0 0.0
      %364 = vmatprep.subr.mxu0 0.0
      %365 = vmatpush1.msra.mxu0 0.0
      %366 = vmatprep.subr.mxu0 0.0
      %367 = vmatpush1.msra.mxu0 0.0
      %368 = vmatprep.subr.mxu0 0.0
      %369 = vmatpush1.msra.mxu0 0.0
      %370 = vmatprep.subr.mxu0 0.0
      %371 = vmatpush1.msra.mxu0 0.0
      %372 = vmatprep.subr.mxu0 0.0
      %373 = vmatpush1.msra.mxu0 0.0
      %374 = vmatprep.subr.mxu0 0.0
      %375 = vmatpush1.msra.mxu0 0.0
      %376 = vmatprep.subr.mxu0 0.0
      %377 = vmatpush1.msra.mxu0 0.0
      %378 = vmatprep.subr.mxu0 0.0
      %379 = vmatpush1.msra.mxu0 0.0
      %380 = vmatprep.subr.mxu0 0.0
      %381 = vmatpush1.msra.mxu0 0.0
      %382 = vmatprep.subr.mxu0 0.0
      %383 = vmatpush1.msra.mxu0 0.0
      %384 = vmatprep.subr.mxu0 0.0
      %385 = vmatpush1.msra.mxu0 0.0
      %386 = vmatprep.subr.mxu0 0.0
      %387 = vmatpush1.msra.mxu0 0.0
      %388 = vmatprep.subr.mxu0 0.0
      %389 = vmatpush1.msra.mxu0 0.0
      %390 = vmatprep.subr.mxu0 0.0
      %391 = vmatpush1.msra.mxu0 0.0
      %392 = vmatprep.subr.mxu0 0.0
      %393 = vmatpush1.msra.mxu0 0.0
      %394 = vmatprep.subr.mxu0 0.0
      %395 = vmatpush1.msra.mxu0 0.0
      %396 = vmatprep.subr.mxu0 0.0
      %397 = vmatpush1.msra.mxu0 0.0
      %398 = vmatprep.subr.mxu0 0.0
      %399 = vmatpush1.msra.mxu0 0.0
      %400 = vmatprep.subr.mxu0 0.0
      %401 = vmatpush1.msra.mxu0 0.0
      %402 = vmatprep.subr.mxu0 0.0
      %403 = vmatpush1.msra.mxu0 0.0
      %404 = vmatprep.subr.mxu0 0.0
      %405 = vmatpush1.msra.mxu0 0.0
      %406 = vmatprep.subr.mxu0 0.0
      %407 = vmatpush1.msra.mxu0 0.0
      %408 = vmatprep.subr.mxu0 0.0
      %409 = vmatpush1.msra.mxu0 0.0
      %410 = vmatprep.subr.mxu0 0.0
      %411 = vmatpush1.msra.mxu0 0.0
      %412 = vmatprep.subr.mxu0 0.0
      %413 = vmatpush1.msra.mxu0 0.0
      %414 = vmatprep.subr.mxu0 0.0
      %415 = vmatpush1.msra.mxu0 0.0
      %416 = vmatprep.subr.mxu0 0.0
      %417 = vmatpush1.msra.mxu0 0.0
      %418 = vmatprep.subr.mxu0 0.0
      %419 = vmatpush1.msra.mxu0 0.0
      %420 = vmatprep.mubr.f32.mxu0 0.0
      %421 = vmatmul.mubr.f32.gmra.mrb[0].mxu0 %v348
      %v422 = vpop.f32.mrb[0].mxu0
      %v423 = vadd.f32 %v272, %v422
      %v424 = vpop.f32.mrb[0].mxu0
      %v425 = vadd.f32 %v274, %v424
      %426 = vdwg.mxu0
      %427 = vmatprep.subr.mxu0 0.0
      %428 = vmatpush1.msra.mxu0 %v354
      %429 = vmatprep.subr.mxu0 0.0
      %430 = vmatpush1.msra.mxu0 0.0
      %431 = vmatprep.subr.mxu0 0.0
      %432 = vmatpush1.msra.mxu0 0.0
      %433 = vmatprep.subr.mxu0 0.0
      %434 = vmatpush1.msra.mxu0 0.0
      %435 = vmatprep.subr.mxu0 0.0
      %436 = vmatpush1.msra.mxu0 0.0
      %437 = vmatprep.subr.mxu0 0.0
      %438 = vmatpush1.msra.mxu0 0.0
      %439 = vmatprep.subr.mxu0 0.0
      %440 = vmatpush1.msra.mxu0 0.0
      %441 = vmatprep.subr.mxu0 0.0
      %442 = vmatpush1.msra.mxu0 0.0
      %443 = vmatprep.subr.mxu0 0.0
      %444 = vmatpush1.msra.mxu0 0.0
      %445 = vmatprep.subr.mxu0 0.0
      %446 = vmatpush1.msra.mxu0 0.0
      %447 = vmatprep.subr.mxu0 0.0
      %448 = vmatpush1.msra.mxu0 0.0
      %449 = vmatprep.subr.mxu0 0.0
      %450 = vmatpush1.msra.mxu0 0.0
      %451 = vmatprep.subr.mxu0 0.0
      %452 = vmatpush1.msra.mxu0 0.0
      %453 = vmatprep.subr.mxu0 0.0
      %454 = vmatpush1.msra.mxu0 0.0
      %455 = vmatprep.subr.mxu0 0.0
      %456 = vmatpush1.msra.mxu0 0.0
      %457 = vmatprep.subr.mxu0 0.0
      %458 = vmatpush1.msra.mxu0 0.0
      %459 = vmatprep.subr.mxu0 0.0
      %460 = vmatpush1.msra.mxu0 0.0
      %461 = vmatprep.subr.mxu0 0.0
      %462 = vmatpush1.msra.mxu0 0.0
      %463 = vmatprep.subr.mxu0 0.0
      %464 = vmatpush1.msra.mxu0 0.0
      %465 = vmatprep.subr.mxu0 0.0
      %466 = vmatpush1.msra.mxu0 0.0
      %467 = vmatprep.subr.mxu0 0.0
      %468 = vmatpush1.msra.mxu0 0.0
      %469 = vmatprep.subr.mxu0 0.0
      %470 = vmatpush1.msra.mxu0 0.0
      %471 = vmatprep.subr.mxu0 0.0
      %472 = vmatpush1.msra.mxu0 0.0
      %473 = vmatprep.subr.mxu0 0.0
      %474 = vmatpush1.msra.mxu0 0.0
      %475 = vmatprep.subr.mxu0 0.0
      %476 = vmatpush1.msra.mxu0 0.0
      %477 = vmatprep.subr.mxu0 0.0
      %478 = vmatpush1.msra.mxu0 0.0
      %479 = vmatprep.subr.mxu0 0.0
      %480 = vmatpush1.msra.mxu0 0.0
      %481 = vmatprep.subr.mxu0 0.0
      %482 = vmatpush1.msra.mxu0 0.0
      %483 = vmatprep.subr.mxu0 0.0
      %484 = vmatpush1.msra.mxu0 0.0
      %485 = vmatprep.subr.mxu0 0.0
      %486 = vmatpush1.msra.mxu0 0.0
      %487 = vmatprep.subr.mxu0 0.0
      %488 = vmatpush1.msra.mxu0 0.0
      %489 = vmatprep.subr.mxu0 0.0
      %490 = vmatpush1.msra.mxu0 0.0
      %491 = vmatprep.mubr.f32.mxu0 0.0
      %492 = vmatmul.mubr.f32.gmra.mrb[0].mxu0 %v348
      %v493 = vpop.f32.mrb[0].mxu0
      %v494 = vadd.f32 %v343, %v493
      %v495 = vpop.f32.mrb[0].mxu0
      %496 = vdwg.mxu0
      %s497 = scalar_lea.vmem %s1, 16
      %v498 = vld [vmem:[%s497] sm:$0xff]
      %499 = vrot.lane.b32.xlu0 %v171, 126
      %v500 = vpop.permute.xlu0 %499
      %501 = vrot.lane.b32.xlu0 %v180, 126
      %v502 = vpop.permute.xlu0 %501
      %503 = vrot.lane.b32.xlu0 %v173, 126
      %v504 = vpop.permute.xlu0 %503
      %505 = vrot.lane.b32.xlu0 %v181, 126
      %v506 = vpop.permute.xlu0 %505
      %vm507 = vcmask 1031168
      %v508 = vsel %vm507, %v500, %v502
      %v509 = vsel %vm507, %v502, %v504
      %v510 = vsel %vm507, %v504, %v506
      %v512 = vsel %vm194, %v498, 0
      %v514 = vsel %vm198, %v508, 0
      %v516 = vsel %vm198, %v509, 0
      %v518 = vsel %vm198, %v510, 0
      %520 = vmatprep.subr.mxu0 %v516
      %521 = vmatpush1.msra.mxu0 %v514
      %522 = vmatprep.subr.mxu0 0.0
      %523 = vmatpush1.msra.mxu0 0.0
      %524 = vmatprep.subr.mxu0 0.0
      %525 = vmatpush1.msra.mxu0 0.0
      %526 = vmatprep.subr.mxu0 0.0
      %527 = vmatpush1.msra.mxu0 0.0
      %528 = vmatprep.subr.mxu0 0.0
      %529 = vmatpush1.msra.mxu0 0.0
      %530 = vmatprep.subr.mxu0 0.0
      %531 = vmatpush1.msra.mxu0 0.0
      %532 = vmatprep.subr.mxu0 0.0
      %533 = vmatpush1.msra.mxu0 0.0
      %534 = vmatprep.subr.mxu0 0.0
      %535 = vmatpush1.msra.mxu0 0.0
      %536 = vmatprep.subr.mxu0 0.0
      %537 = vmatpush1.msra.mxu0 0.0
      %538 = vmatprep.subr.mxu0 0.0
      %539 = vmatpush1.msra.mxu0 0.0
      %540 = vmatprep.subr.mxu0 0.0
      %541 = vmatpush1.msra.mxu0 0.0
      %542 = vmatprep.subr.mxu0 0.0
      %543 = vmatpush1.msra.mxu0 0.0
      %544 = vmatprep.subr.mxu0 0.0
      %545 = vmatpush1.msra.mxu0 0.0
      %546 = vmatprep.subr.mxu0 0.0
      %547 = vmatpush1.msra.mxu0 0.0
      %548 = vmatprep.subr.mxu0 0.0
      %549 = vmatpush1.msra.mxu0 0.0
      %550 = vmatprep.subr.mxu0 0.0
      %551 = vmatpush1.msra.mxu0 0.0
      %552 = vmatprep.subr.mxu0 0.0
      %553 = vmatpush1.msra.mxu0 0.0
      %554 = vmatprep.subr.mxu0 0.0
      %555 = vmatpush1.msra.mxu0 0.0
      %556 = vmatprep.subr.mxu0 0.0
      %557 = vmatpush1.msra.mxu0 0.0
      %558 = vmatprep.subr.mxu0 0.0
      %559 = vmatpush1.msra.mxu0 0.0
      %560 = vmatprep.subr.mxu0 0.0
      %561 = vmatpush1.msra.mxu0 0.0
      %562 = vmatprep.subr.mxu0 0.0
      %563 = vmatpush1.msra.mxu0 0.0
      %564 = vmatprep.subr.mxu0 0.0
      %565 = vmatpush1.msra.mxu0 0.0
      %566 = vmatprep.subr.mxu0 0.0
      %567 = vmatpush1.msra.mxu0 0.0
      %568 = vmatprep.subr.mxu0 0.0
      %569 = vmatpush1.msra.mxu0 0.0
      %570 = vmatprep.subr.mxu0 0.0
      %571 = vmatpush1.msra.mxu0 0.0
      %572 = vmatprep.subr.mxu0 0.0
      %573 = vmatpush1.msra.mxu0 0.0
      %574 = vmatprep.subr.mxu0 0.0
      %575 = vmatpush1.msra.mxu0 0.0
      %576 = vmatprep.subr.mxu0 0.0
      %577 = vmatpush1.msra.mxu0 0.0
      %578 = vmatprep.subr.mxu0 0.0
      %579 = vmatpush1.msra.mxu0 0.0
      %580 = vmatprep.subr.mxu0 0.0
      %581 = vmatpush1.msra.mxu0 0.0
      %582 = vmatprep.subr.mxu0 0.0
      %583 = vmatpush1.msra.mxu0 0.0
      %584 = vmatprep.mubr.f32.mxu0 0.0
      %585 = vmatmul.mubr.f32.gmra.mrb[0].mxu0 %v512
      %v586 = vpop.f32.mrb[0].mxu0
      %v587 = vadd.f32 0.0, %v586
      %v588 = vpop.f32.mrb[0].mxu0
      %v589 = vadd.f32 0.0, %v588
      %590 = vdwg.mxu0
      %591 = vmatprep.subr.mxu0 0.0
      %592 = vmatpush1.msra.mxu0 %v518
      %593 = vmatprep.subr.mxu0 0.0
      %594 = vmatpush1.msra.mxu0 0.0
      %595 = vmatprep.subr.mxu0 0.0
      %596 = vmatpush1.msra.mxu0 0.0
      %597 = vmatprep.subr.mxu0 0.0
      %598 = vmatpush1.msra.mxu0 0.0
      %599 = vmatprep.subr.mxu0 0.0
      %600 = vmatpush1.msra.mxu0 0.0
      %601 = vmatprep.subr.mxu0 0.0
      %602 = vmatpush1.msra.mxu0 0.0
      %603 = vmatprep.subr.mxu0 0.0
      %604 = vmatpush1.msra.mxu0 0.0
      %605 = vmatprep.subr.mxu0 0.0
      %606 = vmatpush1.msra.mxu0 0.0
      %607 = vmatprep.subr.mxu0 0.0
      %608 = vmatpush1.msra.mxu0 0.0
      %609 = vmatprep.subr.mxu0 0.0
      %610 = vmatpush1.msra.mxu0 0.0
      %611 = vmatprep.subr.mxu0 0.0
      %612 = vmatpush1.msra.mxu0 0.0
      %613 = vmatprep.subr.mxu0 0.0
      %614 = vmatpush1.msra.mxu0 0.0
      %615 = vmatprep.subr.mxu0 0.0
      %616 = vmatpush1.msra.mxu0 0.0
      %617 = vmatprep.subr.mxu0 0.0
      %618 = vmatpush1.msra.mxu0 0.0
      %619 = vmatprep.subr.mxu0 0.0
      %620 = vmatpush1.msra.mxu0 0.0
      %621 = vmatprep.subr.mxu0 0.0
      %622 = vmatpush1.msra.mxu0 0.0
      %623 = vmatprep.subr.mxu0 0.0
      %624 = vmatpush1.msra.mxu0 0.0
      %625 = vmatprep.subr.mxu0 0.0
      %626 = vmatpush1.msra.mxu0 0.0
      %627 = vmatprep.subr.mxu0 0.0
      %628 = vmatpush1.msra.mxu0 0.0
      %629 = vmatprep.subr.mxu0 0.0
      %630 = vmatpush1.msra.mxu0 0.0
      %631 = vmatprep.subr.mxu0 0.0
      %632 = vmatpush1.msra.mxu0 0.0
      %633 = vmatprep.subr.mxu0 0.0
      %634 = vmatpush1.msra.mxu0 0.0
      %635 = vmatprep.subr.mxu0 0.0
      %636 = vmatpush1.msra.mxu0 0.0
      %637 = vmatprep.subr.mxu0 0.0
      %638 = vmatpush1.msra.mxu0 0.0
      %639 = vmatprep.subr.mxu0 0.0
      %640 = vmatpush1.msra.mxu0 0.0
      %641 = vmatprep.subr.mxu0 0.0
      %642 = vmatpush1.msra.mxu0 0.0
      %643 = vmatprep.subr.mxu0 0.0
      %644 = vmatpush1.msra.mxu0 0.0
      %645 = vmatprep.subr.mxu0 0.0
      %646 = vmatpush1.msra.mxu0 0.0
      %647 = vmatprep.subr.mxu0 0.0
      %648 = vmatpush1.msra.mxu0 0.0
      %649 = vmatprep.subr.mxu0 0.0
      %650 = vmatpush1.msra.mxu0 0.0
      %651 = vmatprep.subr.mxu0 0.0
      %652 = vmatpush1.msra.mxu0 0.0
      %653 = vmatprep.subr.mxu0 0.0
      %654 = vmatpush1.msra.mxu0 0.0
      %655 = vmatprep.mubr.f32.mxu0 0.0
      %656 = vmatmul.mubr.f32.gmra.mrb[0].mxu0 %v512
      %v657 = vpop.f32.mrb[0].mxu0
      %v658 = vadd.f32 0.0, %v657
      %v659 = vpop.f32.mrb[0].mxu0
      %660 = vdwg.mxu0
      %v661 = vadd.f32 %v423, %v587
      %v662 = vadd.f32 %v425, %v589
      %v663 = vadd.f32 %v494, %v658
      %s664 = scalar_lea.vmem %s1, 24
      %v665 = vld [vmem:[%s664] sm:$0xff]
      %666 = vrot.lane.b32.xlu0 %v171, 110
      %v667 = vpop.permute.xlu0 %666
      %668 = vrot.lane.b32.xlu0 %v180, 110
      %v669 = vpop.permute.xlu0 %668
      %670 = vrot.lane.b32.xlu0 %v173, 110
      %v671 = vpop.permute.xlu0 %670
      %672 = vrot.lane.b32.xlu0 %v181, 110
      %v673 = vpop.permute.xlu0 %672
      %vm674 = vcmask 900096
      %v675 = vsel %vm674, %v667, %v669
      %v676 = vsel %vm674, %v669, %v671
      %v677 = vsel %vm674, %v671, %v673
      %v679 = vsel %vm194, %v665, 0
      %v681 = vsel %vm198, %v675, 0
      %v683 = vsel %vm198, %v676, 0
      %v685 = vsel %vm198, %v677, 0
      %687 = vmatprep.subr.mxu0 %v683
      %688 = vmatpush1.msra.mxu0 %v681
      %689 = vmatprep.subr.mxu0 0.0
      %690 = vmatpush1.msra.mxu0 0.0
      %691 = vmatprep.subr.mxu0 0.0
      %692 = vmatpush1.msra.mxu0 0.0
      %693 = vmatprep.subr.mxu0 0.0
      %694 = vmatpush1.msra.mxu0 0.0
      %695 = vmatprep.subr.mxu0 0.0
      %696 = vmatpush1.msra.mxu0 0.0
      %697 = vmatprep.subr.mxu0 0.0
      %698 = vmatpush1.msra.mxu0 0.0
      %699 = vmatprep.subr.mxu0 0.0
      %700 = vmatpush1.msra.mxu0 0.0
      %701 = vmatprep.subr.mxu0 0.0
      %702 = vmatpush1.msra.mxu0 0.0
      %703 = vmatprep.subr.mxu0 0.0
      %704 = vmatpush1.msra.mxu0 0.0
      %705 = vmatprep.subr.mxu0 0.0
      %706 = vmatpush1.msra.mxu0 0.0
      %707 = vmatprep.subr.mxu0 0.0
      %708 = vmatpush1.msra.mxu0 0.0
      %709 = vmatprep.subr.mxu0 0.0
      %710 = vmatpush1.msra.mxu0 0.0
      %711 = vmatprep.subr.mxu0 0.0
      %712 = vmatpush1.msra.mxu0 0.0
      %713 = vmatprep.subr.mxu0 0.0
      %714 = vmatpush1.msra.mxu0 0.0
      %715 = vmatprep.subr.mxu0 0.0
      %716 = vmatpush1.msra.mxu0 0.0
      %717 = vmatprep.subr.mxu0 0.0
      %718 = vmatpush1.msra.mxu0 0.0
      %719 = vmatprep.subr.mxu0 0.0
      %720 = vmatpush1.msra.mxu0 0.0
      %721 = vmatprep.subr.mxu0 0.0
      %722 = vmatpush1.msra.mxu0 0.0
      %723 = vmatprep.subr.mxu0 0.0
      %724 = vmatpush1.msra.mxu0 0.0
      %725 = vmatprep.subr.mxu0 0.0
      %726 = vmatpush1.msra.mxu0 0.0
      %727 = vmatprep.subr.mxu0 0.0
      %728 = vmatpush1.msra.mxu0 0.0
      %729 = vmatprep.subr.mxu0 0.0
      %730 = vmatpush1.msra.mxu0 0.0
      %731 = vmatprep.subr.mxu0 0.0
      %732 = vmatpush1.msra.mxu0 0.0
      %733 = vmatprep.subr.mxu0 0.0
      %734 = vmatpush1.msra.mxu0 0.0
      %735 = vmatprep.subr.mxu0 0.0
      %736 = vmatpush1.msra.mxu0 0.0
      %737 = vmatprep.subr.mxu0 0.0
      %738 = vmatpush1.msra.mxu0 0.0
      %739 = vmatprep.subr.mxu0 0.0
      %740 = vmatpush1.msra.mxu0 0.0
      %741 = vmatprep.subr.mxu0 0.0
      %742 = vmatpush1.msra.mxu0 0.0
      %743 = vmatprep.subr.mxu0 0.0
      %744 = vmatpush1.msra.mxu0 0.0
      %745 = vmatprep.subr.mxu0 0.0
      %746 = vmatpush1.msra.mxu0 0.0
      %747 = vmatprep.subr.mxu0 0.0
      %748 = vmatpush1.msra.mxu0 0.0
      %749 = vmatprep.subr.mxu0 0.0
      %750 = vmatpush1.msra.mxu0 0.0
      %751 = vmatprep.mubr.f32.mxu0 0.0
      %752 = vmatmul.mubr.f32.gmra.mrb[0].mxu0 %v679
      %v753 = vpop.f32.mrb[0].mxu0
      %v754 = vadd.f32 0.0, %v753
      %v755 = vpop.f32.mrb[0].mxu0
      %v756 = vadd.f32 0.0, %v755
      %757 = vdwg.mxu0
      %758 = vmatprep.subr.mxu0 0.0
      %759 = vmatpush1.msra.mxu0 %v685
      %760 = vmatprep.subr.mxu0 0.0
      %761 = vmatpush1.msra.mxu0 0.0
      %762 = vmatprep.subr.mxu0 0.0
      %763 = vmatpush1.msra.mxu0 0.0
      %764 = vmatprep.subr.mxu0 0.0
      %765 = vmatpush1.msra.mxu0 0.0
      %766 = vmatprep.subr.mxu0 0.0
      %767 = vmatpush1.msra.mxu0 0.0
      %768 = vmatprep.subr.mxu0 0.0
      %769 = vmatpush1.msra.mxu0 0.0
      %770 = vmatprep.subr.mxu0 0.0
      %771 = vmatpush1.msra.mxu0 0.0
      %772 = vmatprep.subr.mxu0 0.0
      %773 = vmatpush1.msra.mxu0 0.0
      %774 = vmatprep.subr.mxu0 0.0
      %775 = vmatpush1.msra.mxu0 0.0
      %776 = vmatprep.subr.mxu0 0.0
      %777 = vmatpush1.msra.mxu0 0.0
      %778 = vmatprep.subr.mxu0 0.0
      %779 = vmatpush1.msra.mxu0 0.0
      %780 = vmatprep.subr.mxu0 0.0
      %781 = vmatpush1.msra.mxu0 0.0
      %782 = vmatprep.subr.mxu0 0.0
      %783 = vmatpush1.msra.mxu0 0.0
      %784 = vmatprep.subr.mxu0 0.0
      %785 = vmatpush1.msra.mxu0 0.0
      %786 = vmatprep.subr.mxu0 0.0
      %787 = vmatpush1.msra.mxu0 0.0
      %788 = vmatprep.subr.mxu0 0.0
      %789 = vmatpush1.msra.mxu0 0.0
      %790 = vmatprep.subr.mxu0 0.0
      %791 = vmatpush1.msra.mxu0 0.0
      %792 = vmatprep.subr.mxu0 0.0
      %793 = vmatpush1.msra.mxu0 0.0
      %794 = vmatprep.subr.mxu0 0.0
      %795 = vmatpush1.msra.mxu0 0.0
      %796 = vmatprep.subr.mxu0 0.0
      %797 = vmatpush1.msra.mxu0 0.0
      %798 = vmatprep.subr.mxu0 0.0
      %799 = vmatpush1.msra.mxu0 0.0
      %800 = vmatprep.subr.mxu0 0.0
      %801 = vmatpush1.msra.mxu0 0.0
      %802 = vmatprep.subr.mxu0 0.0
      %803 = vmatpush1.msra.mxu0 0.0
      %804 = vmatprep.subr.mxu0 0.0
      %805 = vmatpush1.msra.mxu0 0.0
      %806 = vmatprep.subr.mxu0 0.0
      %807 = vmatpush1.msra.mxu0 0.0
      %808 = vmatprep.subr.mxu0 0.0
      %809 = vmatpush1.msra.mxu0 0.0
      %810 = vmatprep.subr.mxu0 0.0
      %811 = vmatpush1.msra.mxu0 0.0
      %812 = vmatprep.subr.mxu0 0.0
      %813 = vmatpush1.msra.mxu0 0.0
      %814 = vmatprep.subr.mxu0 0.0
      %815 = vmatpush1.msra.mxu0 0.0
      %816 = vmatprep.subr.mxu0 0.0
      %817 = vmatpush1.msra.mxu0 0.0
      %818 = vmatprep.subr.mxu0 0.0
      %819 = vmatpush1.msra.mxu0 0.0
      %820 = vmatprep.subr.mxu0 0.0
      %821 = vmatpush1.msra.mxu0 0.0
      %822 = vmatprep.mubr.f32.mxu0 0.0
      %823 = vmatmul.mubr.f32.gmra.mrb[0].mxu0 %v679
      %v824 = vpop.f32.mrb[0].mxu0
      %v825 = vadd.f32 0.0, %v824
      %v826 = vpop.f32.mrb[0].mxu0
      %827 = vdwg.mxu0
      %v828 = vadd.f32 %v661, %v754
      %v829 = vadd.f32 %v662, %v756
      %v830 = vadd.f32 %v663, %v825
      %s831 = scalar_lea.vmem %s1, 32
      %v832 = vld [vmem:[%s831] sm:$0xff]
      %833 = vrot.lane.b32.xlu0 %v171, 109
      %v834 = vpop.permute.xlu0 %833
      %835 = vrot.lane.b32.xlu0 %v180, 109
      %v836 = vpop.permute.xlu0 %835
      %837 = vrot.lane.b32.xlu0 %v173, 109
      %v838 = vpop.permute.xlu0 %837
      %839 = vrot.lane.b32.xlu0 %v181, 109
      %v840 = vpop.permute.xlu0 %839
      %vm841 = vcmask 891904
      %v842 = vsel %vm841, %v834, %v836
      %v843 = vsel %vm841, %v836, %v838
      %v844 = vsel %vm841, %v838, %v840
      %v846 = vsel %vm194, %v832, 0
      %v848 = vsel %vm198, %v842, 0
      %v850 = vsel %vm198, %v843, 0
      %v852 = vsel %vm198, %v844, 0
      %854 = vmatprep.subr.mxu0 %v850
      %855 = vmatpush1.msra.mxu0 %v848
      %856 = vmatprep.subr.mxu0 0.0
      %857 = vmatpush1.msra.mxu0 0.0
      %858 = vmatprep.subr.mxu0 0.0
      %859 = vmatpush1.msra.mxu0 0.0
      %860 = vmatprep.subr.mxu0 0.0
      %861 = vmatpush1.msra.mxu0 0.0
      %862 = vmatprep.subr.mxu0 0.0
      %863 = vmatpush1.msra.mxu0 0.0
      %864 = vmatprep.subr.mxu0 0.0
      %865 = vmatpush1.msra.mxu0 0.0
      %866 = vmatprep.subr.mxu0 0.0
      %867 = vmatpush1.msra.mxu0 0.0
      %868 = vmatprep.subr.mxu0 0.0
      %869 = vmatpush1.msra.mxu0 0.0
      %870 = vmatprep.subr.mxu0 0.0
      %871 = vmatpush1.msra.mxu0 0.0
      %872 = vmatprep.subr.mxu0 0.0
      %873 = vmatpush1.msra.mxu0 0.0
      %874 = vmatprep.subr.mxu0 0.0
      %875 = vmatpush1.msra.mxu0 0.0
      %876 = vmatprep.subr.mxu0 0.0
      %877 = vmatpush1.msra.mxu0 0.0
      %878 = vmatprep.subr.mxu0 0.0
      %879 = vmatpush1.msra.mxu0 0.0
      %880 = vmatprep.subr.mxu0 0.0
      %881 = vmatpush1.msra.mxu0 0.0
      %882 = vmatprep.subr.mxu0 0.0
      %883 = vmatpush1.msra.mxu0 0.0
      %884 = vmatprep.subr.mxu0 0.0
      %885 = vmatpush1.msra.mxu0 0.0
      %886 = vmatprep.subr.mxu0 0.0
      %887 = vmatpush1.msra.mxu0 0.0
      %888 = vmatprep.subr.mxu0 0.0
      %889 = vmatpush1.msra.mxu0 0.0
      %890 = vmatprep.subr.mxu0 0.0
      %891 = vmatpush1.msra.mxu0 0.0
      %892 = vmatprep.subr.mxu0 0.0
      %893 = vmatpush1.msra.mxu0 0.0
      %894 = vmatprep.subr.mxu0 0.0
      %895 = vmatpush1.msra.mxu0 0.0
      %896 = vmatprep.subr.mxu0 0.0
      %897 = vmatpush1.msra.mxu0 0.0
      %898 = vmatprep.subr.mxu0 0.0
      %899 = vmatpush1.msra.mxu0 0.0
      %900 = vmatprep.subr.mxu0 0.0
      %901 = vmatpush1.msra.mxu0 0.0
      %902 = vmatprep.subr.mxu0 0.0
      %903 = vmatpush1.msra.mxu0 0.0
      %904 = vmatprep.subr.mxu0 0.0
      %905 = vmatpush1.msra.mxu0 0.0
      %906 = vmatprep.subr.mxu0 0.0
      %907 = vmatpush1.msra.mxu0 0.0
      %908 = vmatprep.subr.mxu0 0.0
      %909 = vmatpush1.msra.mxu0 0.0
      %910 = vmatprep.subr.mxu0 0.0
      %911 = vmatpush1.msra.mxu0 0.0
      %912 = vmatprep.subr.mxu0 0.0
      %913 = vmatpush1.msra.mxu0 0.0
      %914 = vmatprep.subr.mxu0 0.0
      %915 = vmatpush1.msra.mxu0 0.0
      %916 = vmatprep.subr.mxu0 0.0
      %917 = vmatpush1.msra.mxu0 0.0
      %918 = vmatprep.mubr.f32.mxu0 0.0
      %919 = vmatmul.mubr.f32.gmra.mrb[0].mxu0 %v846
      %v920 = vpop.f32.mrb[0].mxu0
      %v921 = vadd.f32 0.0, %v920
      %v922 = vpop.f32.mrb[0].mxu0
      %v923 = vadd.f32 0.0, %v922
      %924 = vdwg.mxu0
      %925 = vmatprep.subr.mxu0 0.0
      %926 = vmatpush1.msra.mxu0 %v852
      %927 = vmatprep.subr.mxu0 0.0
      %928 = vmatpush1.msra.mxu0 0.0
      %929 = vmatprep.subr.mxu0 0.0
      %930 = vmatpush1.msra.mxu0 0.0
      %931 = vmatprep.subr.mxu0 0.0
      %932 = vmatpush1.msra.mxu0 0.0
      %933 = vmatprep.subr.mxu0 0.0
      %934 = vmatpush1.msra.mxu0 0.0
      %935 = vmatprep.subr.mxu0 0.0
      %936 = vmatpush1.msra.mxu0 0.0
      %937 = vmatprep.subr.mxu0 0.0
      %938 = vmatpush1.msra.mxu0 0.0
      %939 = vmatprep.subr.mxu0 0.0
      %940 = vmatpush1.msra.mxu0 0.0
      %941 = vmatprep.subr.mxu0 0.0
      %942 = vmatpush1.msra.mxu0 0.0
      %943 = vmatprep.subr.mxu0 0.0
      %944 = vmatpush1.msra.mxu0 0.0
      %945 = vmatprep.subr.mxu0 0.0
      %946 = vmatpush1.msra.mxu0 0.0
      %947 = vmatprep.subr.mxu0 0.0
      %948 = vmatpush1.msra.mxu0 0.0
      %949 = vmatprep.subr.mxu0 0.0
      %950 = vmatpush1.msra.mxu0 0.0
      %951 = vmatprep.subr.mxu0 0.0
      %952 = vmatpush1.msra.mxu0 0.0
      %953 = vmatprep.subr.mxu0 0.0
      %954 = vmatpush1.msra.mxu0 0.0
      %955 = vmatprep.subr.mxu0 0.0
      %956 = vmatpush1.msra.mxu0 0.0
      %957 = vmatprep.subr.mxu0 0.0
      %958 = vmatpush1.msra.mxu0 0.0
      %959 = vmatprep.subr.mxu0 0.0
      %960 = vmatpush1.msra.mxu0 0.0
      %961 = vmatprep.subr.mxu0 0.0
      %962 = vmatpush1.msra.mxu0 0.0
      %963 = vmatprep.subr.mxu0 0.0
      %964 = vmatpush1.msra.mxu0 0.0
      %965 = vmatprep.subr.mxu0 0.0
      %966 = vmatpush1.msra.mxu0 0.0
      %967 = vmatprep.subr.mxu0 0.0
      %968 = vmatpush1.msra.mxu0 0.0
      %969 = vmatprep.subr.mxu0 0.0
      %970 = vmatpush1.msra.mxu0 0.0
      %971 = vmatprep.subr.mxu0 0.0
      %972 = vmatpush1.msra.mxu0 0.0
      %973 = vmatprep.subr.mxu0 0.0
      %974 = vmatpush1.msra.mxu0 0.0
      %975 = vmatprep.subr.mxu0 0.0
      %976 = vmatpush1.msra.mxu0 0.0
      %977 = vmatprep.subr.mxu0 0.0
      %978 = vmatpush1.msra.mxu0 0.0
      %979 = vmatprep.subr.mxu0 0.0
      %980 = vmatpush1.msra.mxu0 0.0
      %981 = vmatprep.subr.mxu0 0.0
      %982 = vmatpush1.msra.mxu0 0.0
      %983 = vmatprep.subr.mxu0 0.0
      %984 = vmatpush1.msra.mxu0 0.0
      %985 = vmatprep.subr.mxu0 0.0
      %986 = vmatpush1.msra.mxu0 0.0
      %987 = vmatprep.subr.mxu0 0.0
      %988 = vmatpush1.msra.mxu0 0.0
      %989 = vmatprep.mubr.f32.mxu0 0.0
      %990 = vmatmul.mubr.f32.gmra.mrb[0].mxu0 %v846
      %v991 = vpop.f32.mrb[0].mxu0
      %v992 = vadd.f32 0.0, %v991
      %v993 = vpop.f32.mrb[0].mxu0
      %994 = vdwg.mxu0
      %v995 = vadd.f32 %v828, %v921
      %v996 = vadd.f32 %v829, %v923
      %v997 = vadd.f32 %v830, %v992
      %s998 = scalar_lea.vmem %s1, 40
      %v999 = vld [vmem:[%s998] sm:$0xff]
      %1000 = vrot.lane.b32.xlu0 %v171, 108
      %v1001 = vpop.permute.xlu0 %1000
      %1002 = vrot.lane.b32.xlu0 %v180, 108
      %v1003 = vpop.permute.xlu0 %1002
      %1004 = vrot.lane.b32.xlu0 %v173, 108
      %v1005 = vpop.permute.xlu0 %1004
      %1006 = vrot.lane.b32.xlu0 %v181, 108
      %v1007 = vpop.permute.xlu0 %1006
      %vm1008 = vcmask 883712
      %v1009 = vsel %vm1008, %v1001, %v1003
      %v1010 = vsel %vm1008, %v1003, %v1005
      %v1011 = vsel %vm1008, %v1005, %v1007
      %v1013 = vsel %vm194, %v999, 0
      %v1015 = vsel %vm198, %v1009, 0
      %v1017 = vsel %vm198, %v1010, 0
      %v1019 = vsel %vm198, %v1011, 0
      %1021 = vmatprep.subr.mxu0 %v1017
      %1022 = vmatpush1.msra.mxu0 %v1015
      %1023 = vmatprep.subr.mxu0 0.0
      %1024 = vmatpush1.msra.mxu0 0.0
      %1025 = vmatprep.subr.mxu0 0.0
      %1026 = vmatpush1.msra.mxu0 0.0
      %1027 = vmatprep.subr.mxu0 0.0
      %1028 = vmatpush1.msra.mxu0 0.0
      %1029 = vmatprep.subr.mxu0 0.0
      %1030 = vmatpush1.msra.mxu0 0.0
      %1031 = vmatprep.subr.mxu0 0.0
      %1032 = vmatpush1.msra.mxu0 0.0
      %1033 = vmatprep.subr.mxu0 0.0
      %1034 = vmatpush1.msra.mxu0 0.0
      %1035 = vmatprep.subr.mxu0 0.0
      %1036 = vmatpush1.msra.mxu0 0.0
      %1037 = vmatprep.subr.mxu0 0.0
      %1038 = vmatpush1.msra.mxu0 0.0
      %1039 = vmatprep.subr.mxu0 0.0
      %1040 = vmatpush1.msra.mxu0 0.0
      %1041 = vmatprep.subr.mxu0 0.0
      %1042 = vmatpush1.msra.mxu0 0.0
      %1043 = vmatprep.subr.mxu0 0.0
      %1044 = vmatpush1.msra.mxu0 0.0
      %1045 = vmatprep.subr.mxu0 0.0
      %1046 = vmatpush1.msra.mxu0 0.0
      %1047 = vmatprep.subr.mxu0 0.0
      %1048 = vmatpush1.msra.mxu0 0.0
      %1049 = vmatprep.subr.mxu0 0.0
      %1050 = vmatpush1.msra.mxu0 0.0
      %1051 = vmatprep.subr.mxu0 0.0
      %1052 = vmatpush1.msra.mxu0 0.0
      %1053 = vmatprep.subr.mxu0 0.0
      %1054 = vmatpush1.msra.mxu0 0.0
      %1055 = vmatprep.subr.mxu0 0.0
      %1056 = vmatpush1.msra.mxu0 0.0
      %1057 = vmatprep.subr.mxu0 0.0
      %1058 = vmatpush1.msra.mxu0 0.0
      %1059 = vmatprep.subr.mxu0 0.0
      %1060 = vmatpush1.msra.mxu0 0.0
      %1061 = vmatprep.subr.mxu0 0.0
      %1062 = vmatpush1.msra.mxu0 0.0
      %1063 = vmatprep.subr.mxu0 0.0
      %1064 = vmatpush1.msra.mxu0 0.0
      %1065 = vmatprep.subr.mxu0 0.0
      %1066 = vmatpush1.msra.mxu0 0.0
      %1067 = vmatprep.subr.mxu0 0.0
      %1068 = vmatpush1.msra.mxu0 0.0
      %1069 = vmatprep.subr.mxu0 0.0
      %1070 = vmatpush1.msra.mxu0 0.0
      %1071 = vmatprep.subr.mxu0 0.0
      %1072 = vmatpush1.msra.mxu0 0.0
      %1073 = vmatprep.subr.mxu0 0.0
      %1074 = vmatpush1.msra.mxu0 0.0
      %1075 = vmatprep.subr.mxu0 0.0
      %1076 = vmatpush1.msra.mxu0 0.0
      %1077 = vmatprep.subr.mxu0 0.0
      %1078 = vmatpush1.msra.mxu0 0.0
      %1079 = vmatprep.subr.mxu0 0.0
      %1080 = vmatpush1.msra.mxu0 0.0
      %1081 = vmatprep.subr.mxu0 0.0
      %1082 = vmatpush1.msra.mxu0 0.0
      %1083 = vmatprep.subr.mxu0 0.0
      %1084 = vmatpush1.msra.mxu0 0.0
      %1085 = vmatprep.mubr.f32.mxu0 0.0
      %1086 = vmatmul.mubr.f32.gmra.mrb[0].mxu0 %v1013
      %v1087 = vpop.f32.mrb[0].mxu0
      %v1088 = vadd.f32 0.0, %v1087
      %v1089 = vpop.f32.mrb[0].mxu0
      %v1090 = vadd.f32 0.0, %v1089
      %1091 = vdwg.mxu0
      %1092 = vmatprep.subr.mxu0 0.0
      %1093 = vmatpush1.msra.mxu0 %v1019
      %1094 = vmatprep.subr.mxu0 0.0
      %1095 = vmatpush1.msra.mxu0 0.0
      %1096 = vmatprep.subr.mxu0 0.0
      %1097 = vmatpush1.msra.mxu0 0.0
      %1098 = vmatprep.subr.mxu0 0.0
      %1099 = vmatpush1.msra.mxu0 0.0
      %1100 = vmatprep.subr.mxu0 0.0
      %1101 = vmatpush1.msra.mxu0 0.0
      %1102 = vmatprep.subr.mxu0 0.0
      %1103 = vmatpush1.msra.mxu0 0.0
      %1104 = vmatprep.subr.mxu0 0.0
      %1105 = vmatpush1.msra.mxu0 0.0
      %1106 = vmatprep.subr.mxu0 0.0
      %1107 = vmatpush1.msra.mxu0 0.0
      %1108 = vmatprep.subr.mxu0 0.0
      %1109 = vmatpush1.msra.mxu0 0.0
      %1110 = vmatprep.subr.mxu0 0.0
      %1111 = vmatpush1.msra.mxu0 0.0
      %1112 = vmatprep.subr.mxu0 0.0
      %1113 = vmatpush1.msra.mxu0 0.0
      %1114 = vmatprep.subr.mxu0 0.0
      %1115 = vmatpush1.msra.mxu0 0.0
      %1116 = vmatprep.subr.mxu0 0.0
      %1117 = vmatpush1.msra.mxu0 0.0
      %1118 = vmatprep.subr.mxu0 0.0
      %1119 = vmatpush1.msra.mxu0 0.0
      %1120 = vmatprep.subr.mxu0 0.0
      %1121 = vmatpush1.msra.mxu0 0.0
      %1122 = vmatprep.subr.mxu0 0.0
      %1123 = vmatpush1.msra.mxu0 0.0
      %1124 = vmatprep.subr.mxu0 0.0
      %1125 = vmatpush1.msra.mxu0 0.0
      %1126 = vmatprep.subr.mxu0 0.0
      %1127 = vmatpush1.msra.mxu0 0.0
      %1128 = vmatprep.subr.mxu0 0.0
      %1129 = vmatpush1.msra.mxu0 0.0
      %1130 = vmatprep.subr.mxu0 0.0
      %1131 = vmatpush1.msra.mxu0 0.0
      %1132 = vmatprep.subr.mxu0 0.0
      %1133 = vmatpush1.msra.mxu0 0.0
      %1134 = vmatprep.subr.mxu0 0.0
      %1135 = vmatpush1.msra.mxu0 0.0
      %1136 = vmatprep.subr.mxu0 0.0
      %1137 = vmatpush1.msra.mxu0 0.0
      %1138 = vmatprep.subr.mxu0 0.0
      %1139 = vmatpush1.msra.mxu0 0.0
      %1140 = vmatprep.subr.mxu0 0.0
      %1141 = vmatpush1.msra.mxu0 0.0
      %1142 = vmatprep.subr.mxu0 0.0
      %1143 = vmatpush1.msra.mxu0 0.0
      %1144 = vmatprep.subr.mxu0 0.0
      %1145 = vmatpush1.msra.mxu0 0.0
      %1146 = vmatprep.subr.mxu0 0.0
      %1147 = vmatpush1.msra.mxu0 0.0
      %1148 = vmatprep.subr.mxu0 0.0
      %1149 = vmatpush1.msra.mxu0 0.0
      %1150 = vmatprep.subr.mxu0 0.0
      %1151 = vmatpush1.msra.mxu0 0.0
      %1152 = vmatprep.subr.mxu0 0.0
      %1153 = vmatpush1.msra.mxu0 0.0
      %1154 = vmatprep.subr.mxu0 0.0
      %1155 = vmatpush1.msra.mxu0 0.0
      %1156 = vmatprep.mubr.f32.mxu0 0.0
      %1157 = vmatmul.mubr.f32.gmra.mrb[0].mxu0 %v1013
      %v1158 = vpop.f32.mrb[0].mxu0
      %v1159 = vadd.f32 0.0, %v1158
      %v1160 = vpop.f32.mrb[0].mxu0
      %1161 = vdwg.mxu0
      %v1162 = vadd.f32 %v995, %v1088
      %v1163 = vadd.f32 %v996, %v1090
      %v1164 = vadd.f32 %v997, %v1159
      %1166 = vset.pattern.permute.xlu0 0
      %1167 = vperm.xlu0 %1166, %v174
      %v1168 = vpop.permute.xlu0 %1167
      %v1170 = vadd.f32 %v1162, %v1168
      %v1171 = vadd.f32 %v1163, %v1168
      %v1172 = vadd.f32 %v1164, %v1168
      %1173 = vst [vmem:[%s170] sm:$0xff] %v1170
      %1174 = vst [vmem:[%s170 + $0x8] sm:$0xff] %v1171
      %1175 = vst [vmem:[%s170 + $0x10] sm:$0xff] %v1172
      %s1176 = scalar_lea.vmem %s1, 48
      %v1177 = vld [vmem:[%s1176] sm:$0xff]
      %s1178 = scalar_lea.vmem %s1, 56
      %v1179 = vld [vmem:[%s1178] sm:$0xff]
      %v1181 = vsel %vm194, %v1179, 0
      %1183 = vmatprep.subr.mxu0 %v850
      %1184 = vmatpush1.msra.mxu0 %v848
      %1185 = vmatprep.subr.mxu0 0.0
      %1186 = vmatpush1.msra.mxu0 0.0
      %1187 = vmatprep.subr.mxu0 0.0
      %1188 = vmatpush1.msra.mxu0 0.0
      %1189 = vmatprep.subr.mxu0 0.0
      %1190 = vmatpush1.msra.mxu0 0.0
      %1191 = vmatprep.subr.mxu0 0.0
      %1192 = vmatpush1.msra.mxu0 0.0
      %1193 = vmatprep.subr.mxu0 0.0
      %1194 = vmatpush1.msra.mxu0 0.0
      %1195 = vmatprep.subr.mxu0 0.0
      %1196 = vmatpush1.msra.mxu0 0.0
      %1197 = vmatprep.subr.mxu0 0.0
      %1198 = vmatpush1.msra.mxu0 0.0
      %1199 = vmatprep.subr.mxu0 0.0
      %1200 = vmatpush1.msra.mxu0 0.0
      %1201 = vmatprep.subr.mxu0 0.0
      %1202 = vmatpush1.msra.mxu0 0.0
      %1203 = vmatprep.subr.mxu0 0.0
      %1204 = vmatpush1.msra.mxu0 0.0
      %1205 = vmatprep.subr.mxu0 0.0
      %1206 = vmatpush1.msra.mxu0 0.0
      %1207 = vmatprep.subr.mxu0 0.0
      %1208 = vmatpush1.msra.mxu0 0.0
      %1209 = vmatprep.subr.mxu0 0.0
      %1210 = vmatpush1.msra.mxu0 0.0
      %1211 = vmatprep.subr.mxu0 0.0
      %1212 = vmatpush1.msra.mxu0 0.0
      %1213 = vmatprep.subr.mxu0 0.0
      %1214 = vmatpush1.msra.mxu0 0.0
      %1215 = vmatprep.subr.mxu0 0.0
      %1216 = vmatpush1.msra.mxu0 0.0
      %1217 = vmatprep.subr.mxu0 0.0
      %1218 = vmatpush1.msra.mxu0 0.0
      %1219 = vmatprep.subr.mxu0 0.0
      %1220 = vmatpush1.msra.mxu0 0.0
      %1221 = vmatprep.subr.mxu0 0.0
      %1222 = vmatpush1.msra.mxu0 0.0
      %1223 = vmatprep.subr.mxu0 0.0
      %1224 = vmatpush1.msra.mxu0 0.0
      %1225 = vmatprep.subr.mxu0 0.0
      %1226 = vmatpush1.msra.mxu0 0.0
      %1227 = vmatprep.subr.mxu0 0.0
      %1228 = vmatpush1.msra.mxu0 0.0
      %1229 = vmatprep.subr.mxu0 0.0
      %1230 = vmatpush1.msra.mxu0 0.0
      %1231 = vmatprep.subr.mxu0 0.0
      %1232 = vmatpush1.msra.mxu0 0.0
      %1233 = vmatprep.subr.mxu0 0.0
      %1234 = vmatpush1.msra.mxu0 0.0
      %1235 = vmatprep.subr.mxu0 0.0
      %1236 = vmatpush1.msra.mxu0 0.0
      %1237 = vmatprep.subr.mxu0 0.0
      %1238 = vmatpush1.msra.mxu0 0.0
      %1239 = vmatprep.subr.mxu0 0.0
      %1240 = vmatpush1.msra.mxu0 0.0
      %1241 = vmatprep.subr.mxu0 0.0
      %1242 = vmatpush1.msra.mxu0 0.0
      %1243 = vmatprep.subr.mxu0 0.0
      %1244 = vmatpush1.msra.mxu0 0.0
      %1245 = vmatprep.subr.mxu0 0.0
      %1246 = vmatpush1.msra.mxu0 0.0
      %1247 = vmatprep.mubr.f32.mxu0 0.0
      %1248 = vmatmul.mubr.f32.gmra.mrb[0].mxu0 %v1181
      %v1249 = vpop.f32.mrb[0].mxu0
      %v1250 = vadd.f32 0.0, %v1249
      %v1251 = vpop.f32.mrb[0].mxu0
      %v1252 = vadd.f32 0.0, %v1251
      %1253 = vdwg.mxu0
      %1254 = vmatprep.subr.mxu0 0.0
      %1255 = vmatpush1.msra.mxu0 %v852
      %1256 = vmatprep.subr.mxu0 0.0
      %1257 = vmatpush1.msra.mxu0 0.0
      %1258 = vmatprep.subr.mxu0 0.0
      %1259 = vmatpush1.msra.mxu0 0.0
      %1260 = vmatprep.subr.mxu0 0.0
      %1261 = vmatpush1.msra.mxu0 0.0
      %1262 = vmatprep.subr.mxu0 0.0
      %1263 = vmatpush1.msra.mxu0 0.0
      %1264 = vmatprep.subr.mxu0 0.0
      %1265 = vmatpush1.msra.mxu0 0.0
      %1266 = vmatprep.subr.mxu0 0.0
      %1267 = vmatpush1.msra.mxu0 0.0
      %1268 = vmatprep.subr.mxu0 0.0
      %1269 = vmatpush1.msra.mxu0 0.0
      %1270 = vmatprep.subr.mxu0 0.0
      %1271 = vmatpush1.msra.mxu0 0.0
      %1272 = vmatprep.subr.mxu0 0.0
      %1273 = vmatpush1.msra.mxu0 0.0
      %1274 = vmatprep.subr.mxu0 0.0
      %1275 = vmatpush1.msra.mxu0 0.0
      %1276 = vmatprep.subr.mxu0 0.0
      %1277 = vmatpush1.msra.mxu0 0.0
      %1278 = vmatprep.subr.mxu0 0.0
      %1279 = vmatpush1.msra.mxu0 0.0
      %1280 = vmatprep.subr.mxu0 0.0
      %1281 = vmatpush1.msra.mxu0 0.0
      %1282 = vmatprep.subr.mxu0 0.0
      %1283 = vmatpush1.msra.mxu0 0.0
      %1284 = vmatprep.subr.mxu0 0.0
      %1285 = vmatpush1.msra.mxu0 0.0
      %1286 = vmatprep.subr.mxu0 0.0
      %1287 = vmatpush1.msra.mxu0 0.0
      %1288 = vmatprep.subr.mxu0 0.0
      %1289 = vmatpush1.msra.mxu0 0.0
      %1290 = vmatprep.subr.mxu0 0.0
      %1291 = vmatpush1.msra.mxu0 0.0
      %1292 = vmatprep.subr.mxu0 0.0
      %1293 = vmatpush1.msra.mxu0 0.0
      %1294 = vmatprep.subr.mxu0 0.0
      %1295 = vmatpush1.msra.mxu0 0.0
      %1296 = vmatprep.subr.mxu0 0.0
      %1297 = vmatpush1.msra.mxu0 0.0
      %1298 = vmatprep.subr.mxu0 0.0
      %1299 = vmatpush1.msra.mxu0 0.0
      %1300 = vmatprep.subr.mxu0 0.0
      %1301 = vmatpush1.msra.mxu0 0.0
      %1302 = vmatprep.subr.mxu0 0.0
      %1303 = vmatpush1.msra.mxu0 0.0
      %1304 = vmatprep.subr.mxu0 0.0
      %1305 = vmatpush1.msra.mxu0 0.0
      %1306 = vmatprep.subr.mxu0 0.0
      %1307 = vmatpush1.msra.mxu0 0.0
      %1308 = vmatprep.subr.mxu0 0.0
      %1309 = vmatpush1.msra.mxu0 0.0
      %1310 = vmatprep.subr.mxu0 0.0
      %1311 = vmatpush1.msra.mxu0 0.0
      %1312 = vmatprep.subr.mxu0 0.0
      %1313 = vmatpush1.msra.mxu0 0.0
      %1314 = vmatprep.subr.mxu0 0.0
      %1315 = vmatpush1.msra.mxu0 0.0
      %1316 = vmatprep.subr.mxu0 0.0
      %1317 = vmatpush1.msra.mxu0 0.0
      %1318 = vmatprep.mubr.f32.mxu0 0.0
      %1319 = vmatmul.mubr.f32.gmra.mrb[0].mxu0 %v1181
      %v1320 = vpop.f32.mrb[0].mxu0
      %v1321 = vadd.f32 0.0, %v1320
      %v1322 = vpop.f32.mrb[0].mxu0
      %1323 = vdwg.mxu0
      %v1325 = vsel %vm194, %v1177, 0
      %1327 = vmatprep.subr.mxu0 %v683
      %1328 = vmatpush1.msra.mxu0 %v681
      %1329 = vmatprep.subr.mxu0 0.0
      %1330 = vmatpush1.msra.mxu0 0.0
      %1331 = vmatprep.subr.mxu0 0.0
      %1332 = vmatpush1.msra.mxu0 0.0
      %1333 = vmatprep.subr.mxu0 0.0
      %1334 = vmatpush1.msra.mxu0 0.0
      %1335 = vmatprep.subr.mxu0 0.0
      %1336 = vmatpush1.msra.mxu0 0.0
      %1337 = vmatprep.subr.mxu0 0.0
      %1338 = vmatpush1.msra.mxu0 0.0
      %1339 = vmatprep.subr.mxu0 0.0
      %1340 = vmatpush1.msra.mxu0 0.0
      %1341 = vmatprep.subr.mxu0 0.0
      %1342 = vmatpush1.msra.mxu0 0.0
      %1343 = vmatprep.subr.mxu0 0.0
      %1344 = vmatpush1.msra.mxu0 0.0
      %1345 = vmatprep.subr.mxu0 0.0
      %1346 = vmatpush1.msra.mxu0 0.0
      %1347 = vmatprep.subr.mxu0 0.0
      %1348 = vmatpush1.msra.mxu0 0.0
      %1349 = vmatprep.subr.mxu0 0.0
      %1350 = vmatpush1.msra.mxu0 0.0
      %1351 = vmatprep.subr.mxu0 0.0
      %1352 = vmatpush1.msra.mxu0 0.0
      %1353 = vmatprep.subr.mxu0 0.0
      %1354 = vmatpush1.msra.mxu0 0.0
      %1355 = vmatprep.subr.mxu0 0.0
      %1356 = vmatpush1.msra.mxu0 0.0
      %1357 = vmatprep.subr.mxu0 0.0
      %1358 = vmatpush1.msra.mxu0 0.0
      %1359 = vmatprep.subr.mxu0 0.0
      %1360 = vmatpush1.msra.mxu0 0.0
      %1361 = vmatprep.subr.mxu0 0.0
      %1362 = vmatpush1.msra.mxu0 0.0
      %1363 = vmatprep.subr.mxu0 0.0
      %1364 = vmatpush1.msra.mxu0 0.0
      %1365 = vmatprep.subr.mxu0 0.0
      %1366 = vmatpush1.msra.mxu0 0.0
      %1367 = vmatprep.subr.mxu0 0.0
      %1368 = vmatpush1.msra.mxu0 0.0
      %1369 = vmatprep.subr.mxu0 0.0
      %1370 = vmatpush1.msra.mxu0 0.0
      %1371 = vmatprep.subr.mxu0 0.0
      %1372 = vmatpush1.msra.mxu0 0.0
      %1373 = vmatprep.subr.mxu0 0.0
      %1374 = vmatpush1.msra.mxu0 0.0
      %1375 = vmatprep.subr.mxu0 0.0
      %1376 = vmatpush1.msra.mxu0 0.0
      %1377 = vmatprep.subr.mxu0 0.0
      %1378 = vmatpush1.msra.mxu0 0.0
      %1379 = vmatprep.subr.mxu0 0.0
      %1380 = vmatpush1.msra.mxu0 0.0
      %1381 = vmatprep.subr.mxu0 0.0
      %1382 = vmatpush1.msra.mxu0 0.0
      %1383 = vmatprep.subr.mxu0 0.0
      %1384 = vmatpush1.msra.mxu0 0.0
      %1385 = vmatprep.subr.mxu0 0.0
      %1386 = vmatpush1.msra.mxu0 0.0
      %1387 = vmatprep.subr.mxu0 0.0
      %1388 = vmatpush1.msra.mxu0 0.0
      %1389 = vmatprep.subr.mxu0 0.0
      %1390 = vmatpush1.msra.mxu0 0.0
      %1391 = vmatprep.mubr.f32.mxu0 0.0
      %1392 = vmatmul.mubr.f32.gmra.mrb[0].mxu0 %v1325
      %v1393 = vpop.f32.mrb[0].mxu0
      %v1394 = vadd.f32 %v1250, %v1393
      %v1395 = vpop.f32.mrb[0].mxu0
      %v1396 = vadd.f32 %v1252, %v1395
      %1397 = vdwg.mxu0
      %1398 = vmatprep.subr.mxu0 0.0
      %1399 = vmatpush1.msra.mxu0 %v685
      %1400 = vmatprep.subr.mxu0 0.0
      %1401 = vmatpush1.msra.mxu0 0.0
      %1402 = vmatprep.subr.mxu0 0.0
      %1403 = vmatpush1.msra.mxu0 0.0
      %1404 = vmatprep.subr.mxu0 0.0
      %1405 = vmatpush1.msra.mxu0 0.0
      %1406 = vmatprep.subr.mxu0 0.0
      %1407 = vmatpush1.msra.mxu0 0.0
      %1408 = vmatprep.subr.mxu0 0.0
      %1409 = vmatpush1.msra.mxu0 0.0
      %1410 = vmatprep.subr.mxu0 0.0
      %1411 = vmatpush1.msra.mxu0 0.0
      %1412 = vmatprep.subr.mxu0 0.0
      %1413 = vmatpush1.msra.mxu0 0.0
      %1414 = vmatprep.subr.mxu0 0.0
      %1415 = vmatpush1.msra.mxu0 0.0
      %1416 = vmatprep.subr.mxu0 0.0
      %1417 = vmatpush1.msra.mxu0 0.0
      %1418 = vmatprep.subr.mxu0 0.0
      %1419 = vmatpush1.msra.mxu0 0.0
      %1420 = vmatprep.subr.mxu0 0.0
      %1421 = vmatpush1.msra.mxu0 0.0
      %1422 = vmatprep.subr.mxu0 0.0
      %1423 = vmatpush1.msra.mxu0 0.0
      %1424 = vmatprep.subr.mxu0 0.0
      %1425 = vmatpush1.msra.mxu0 0.0
      %1426 = vmatprep.subr.mxu0 0.0
      %1427 = vmatpush1.msra.mxu0 0.0
      %1428 = vmatprep.subr.mxu0 0.0
      %1429 = vmatpush1.msra.mxu0 0.0
      %1430 = vmatprep.subr.mxu0 0.0
      %1431 = vmatpush1.msra.mxu0 0.0
      %1432 = vmatprep.subr.mxu0 0.0
      %1433 = vmatpush1.msra.mxu0 0.0
      %1434 = vmatprep.subr.mxu0 0.0
      %1435 = vmatpush1.msra.mxu0 0.0
      %1436 = vmatprep.subr.mxu0 0.0
      %1437 = vmatpush1.msra.mxu0 0.0
      %1438 = vmatprep.subr.mxu0 0.0
      %1439 = vmatpush1.msra.mxu0 0.0
      %1440 = vmatprep.subr.mxu0 0.0
      %1441 = vmatpush1.msra.mxu0 0.0
      %1442 = vmatprep.subr.mxu0 0.0
      %1443 = vmatpush1.msra.mxu0 0.0
      %1444 = vmatprep.subr.mxu0 0.0
      %1445 = vmatpush1.msra.mxu0 0.0
      %1446 = vmatprep.subr.mxu0 0.0
      %1447 = vmatpush1.msra.mxu0 0.0
      %1448 = vmatprep.subr.mxu0 0.0
      %1449 = vmatpush1.msra.mxu0 0.0
      %1450 = vmatprep.subr.mxu0 0.0
      %1451 = vmatpush1.msra.mxu0 0.0
      %1452 = vmatprep.subr.mxu0 0.0
      %1453 = vmatpush1.msra.mxu0 0.0
      %1454 = vmatprep.subr.mxu0 0.0
      %1455 = vmatpush1.msra.mxu0 0.0
      %1456 = vmatprep.subr.mxu0 0.0
      %1457 = vmatpush1.msra.mxu0 0.0
      %1458 = vmatprep.subr.mxu0 0.0
      %1459 = vmatpush1.msra.mxu0 0.0
      %1460 = vmatprep.subr.mxu0 0.0
      %1461 = vmatpush1.msra.mxu0 0.0
      %1462 = vmatprep.mubr.f32.mxu0 0.0
      %1463 = vmatmul.mubr.f32.gmra.mrb[0].mxu0 %v1325
      %v1464 = vpop.f32.mrb[0].mxu0
      %v1465 = vadd.f32 %v1321, %v1464
      %v1466 = vpop.f32.mrb[0].mxu0
      %1467 = vdwg.mxu0
      %s1468 = scalar_lea.vmem %s1, 64
      %v1469 = vld [vmem:[%s1468] sm:$0xff]
      %v1471 = vsel %vm194, %v1469, 0
      %1473 = vmatprep.subr.mxu0 %v1017
      %1474 = vmatpush1.msra.mxu0 %v1015
      %1475 = vmatprep.subr.mxu0 0.0
      %1476 = vmatpush1.msra.mxu0 0.0
      %1477 = vmatprep.subr.mxu0 0.0
      %1478 = vmatpush1.msra.mxu0 0.0
      %1479 = vmatprep.subr.mxu0 0.0
      %1480 = vmatpush1.msra.mxu0 0.0
      %1481 = vmatprep.subr.mxu0 0.0
      %1482 = vmatpush1.msra.mxu0 0.0
      %1483 = vmatprep.subr.mxu0 0.0
      %1484 = vmatpush1.msra.mxu0 0.0
      %1485 = vmatprep.subr.mxu0 0.0
      %1486 = vmatpush1.msra.mxu0 0.0
      %1487 = vmatprep.subr.mxu0 0.0
      %1488 = vmatpush1.msra.mxu0 0.0
      %1489 = vmatprep.subr.mxu0 0.0
      %1490 = vmatpush1.msra.mxu0 0.0
      %1491 = vmatprep.subr.mxu0 0.0
      %1492 = vmatpush1.msra.mxu0 0.0
      %1493 = vmatprep.subr.mxu0 0.0
      %1494 = vmatpush1.msra.mxu0 0.0
      %1495 = vmatprep.subr.mxu0 0.0
      %1496 = vmatpush1.msra.mxu0 0.0
      %1497 = vmatprep.subr.mxu0 0.0
      %1498 = vmatpush1.msra.mxu0 0.0
      %1499 = vmatprep.subr.mxu0 0.0
      %1500 = vmatpush1.msra.mxu0 0.0
      %1501 = vmatprep.subr.mxu0 0.0
      %1502 = vmatpush1.msra.mxu0 0.0
      %1503 = vmatprep.subr.mxu0 0.0
      %1504 = vmatpush1.msra.mxu0 0.0
      %1505 = vmatprep.subr.mxu0 0.0
      %1506 = vmatpush1.msra.mxu0 0.0
      %1507 = vmatprep.subr.mxu0 0.0
      %1508 = vmatpush1.msra.mxu0 0.0
      %1509 = vmatprep.subr.mxu0 0.0
      %1510 = vmatpush1.msra.mxu0 0.0
      %1511 = vmatprep.subr.mxu0 0.0
      %1512 = vmatpush1.msra.mxu0 0.0
      %1513 = vmatprep.subr.mxu0 0.0
      %1514 = vmatpush1.msra.mxu0 0.0
      %1515 = vmatprep.subr.mxu0 0.0
      %1516 = vmatpush1.msra.mxu0 0.0
      %1517 = vmatprep.subr.mxu0 0.0
      %1518 = vmatpush1.msra.mxu0 0.0
      %1519 = vmatprep.subr.mxu0 0.0
      %1520 = vmatpush1.msra.mxu0 0.0
      %1521 = vmatprep.subr.mxu0 0.0
      %1522 = vmatpush1.msra.mxu0 0.0
      %1523 = vmatprep.subr.mxu0 0.0
      %1524 = vmatpush1.msra.mxu0 0.0
      %1525 = vmatprep.subr.mxu0 0.0
      %1526 = vmatpush1.msra.mxu0 0.0
      %1527 = vmatprep.subr.mxu0 0.0
      %1528 = vmatpush1.msra.mxu0 0.0
      %1529 = vmatprep.subr.mxu0 0.0
      %1530 = vmatpush1.msra.mxu0 0.0
      %1531 = vmatprep.subr.mxu0 0.0
      %1532 = vmatpush1.msra.mxu0 0.0
      %1533 = vmatprep.subr.mxu0 0.0
      %1534 = vmatpush1.msra.mxu0 0.0
      %1535 = vmatprep.subr.mxu0 0.0
      %1536 = vmatpush1.msra.mxu0 0.0
      %1537 = vmatprep.mubr.f32.mxu0 0.0
      %1538 = vmatmul.mubr.f32.gmra.mrb[0].mxu0 %v1471
      %v1539 = vpop.f32.mrb[0].mxu0
      %v1540 = vadd.f32 0.0, %v1539
      %v1541 = vpop.f32.mrb[0].mxu0
      %v1542 = vadd.f32 0.0, %v1541
      %1543 = vdwg.mxu0
      %1544 = vmatprep.subr.mxu0 0.0
      %1545 = vmatpush1.msra.mxu0 %v1019
      %1546 = vmatprep.subr.mxu0 0.0
      %1547 = vmatpush1.msra.mxu0 0.0
      %1548 = vmatprep.subr.mxu0 0.0
      %1549 = vmatpush1.msra.mxu0 0.0
      %1550 = vmatprep.subr.mxu0 0.0
      %1551 = vmatpush1.msra.mxu0 0.0
      %1552 = vmatprep.subr.mxu0 0.0
      %1553 = vmatpush1.msra.mxu0 0.0
      %1554 = vmatprep.subr.mxu0 0.0
      %1555 = vmatpush1.msra.mxu0 0.0
      %1556 = vmatprep.subr.mxu0 0.0
      %1557 = vmatpush1.msra.mxu0 0.0
      %1558 = vmatprep.subr.mxu0 0.0
      %1559 = vmatpush1.msra.mxu0 0.0
      %1560 = vmatprep.subr.mxu0 0.0
      %1561 = vmatpush1.msra.mxu0 0.0
      %1562 = vmatprep.subr.mxu0 0.0
      %1563 = vmatpush1.msra.mxu0 0.0
      %1564 = vmatprep.subr.mxu0 0.0
      %1565 = vmatpush1.msra.mxu0 0.0
      %1566 = vmatprep.subr.mxu0 0.0
      %1567 = vmatpush1.msra.mxu0 0.0
      %1568 = vmatprep.subr.mxu0 0.0
      %1569 = vmatpush1.msra.mxu0 0.0
      %1570 = vmatprep.subr.mxu0 0.0
      %1571 = vmatpush1.msra.mxu0 0.0
      %1572 = vmatprep.subr.mxu0 0.0
      %1573 = vmatpush1.msra.mxu0 0.0
      %1574 = vmatprep.subr.mxu0 0.0
      %1575 = vmatpush1.msra.mxu0 0.0
      %1576 = vmatprep.subr.mxu0 0.0
      %1577 = vmatpush1.msra.mxu0 0.0
      %1578 = vmatprep.subr.mxu0 0.0
      %1579 = vmatpush1.msra.mxu0 0.0
      %1580 = vmatprep.subr.mxu0 0.0
      %1581 = vmatpush1.msra.mxu0 0.0
      %1582 = vmatprep.subr.mxu0 0.0
      %1583 = vmatpush1.msra.mxu0 0.0
      %1584 = vmatprep.subr.mxu0 0.0
      %1585 = vmatpush1.msra.mxu0 0.0
      %1586 = vmatprep.subr.mxu0 0.0
      %1587 = vmatpush1.msra.mxu0 0.0
      %1588 = vmatprep.subr.mxu0 0.0
      %1589 = vmatpush1.msra.mxu0 0.0
      %1590 = vmatprep.subr.mxu0 0.0
      %1591 = vmatpush1.msra.mxu0 0.0
      %1592 = vmatprep.subr.mxu0 0.0
      %1593 = vmatpush1.msra.mxu0 0.0
      %1594 = vmatprep.subr.mxu0 0.0
      %1595 = vmatpush1.msra.mxu0 0.0
      %1596 = vmatprep.subr.mxu0 0.0
      %1597 = vmatpush1.msra.mxu0 0.0
      %1598 = vmatprep.subr.mxu0 0.0
      %1599 = vmatpush1.msra.mxu0 0.0
      %1600 = vmatprep.subr.mxu0 0.0
      %1601 = vmatpush1.msra.mxu0 0.0
      %1602 = vmatprep.subr.mxu0 0.0
      %1603 = vmatpush1.msra.mxu0 0.0
      %1604 = vmatprep.subr.mxu0 0.0
      %1605 = vmatpush1.msra.mxu0 0.0
      %1606 = vmatprep.subr.mxu0 0.0
      %1607 = vmatpush1.msra.mxu0 0.0
      %1608 = vmatprep.mubr.f32.mxu0 0.0
      %1609 = vmatmul.mubr.f32.gmra.mrb[0].mxu0 %v1471
      %v1610 = vpop.f32.mrb[0].mxu0
      %v1611 = vadd.f32 0.0, %v1610
      %v1612 = vpop.f32.mrb[0].mxu0
      %1613 = vdwg.mxu0
      %v1614 = vadd.f32 %v1394, %v1540
      %v1615 = vadd.f32 %v1396, %v1542
      %v1616 = vadd.f32 %v1465, %v1611
      %s1617 = scalar_lea.vmem %s1, 72
      %v1618 = vld [vmem:[%s1617] sm:$0xff]
      %1619 = vrot.lane.b32.xlu0 %v171, 92
      %v1620 = vpop.permute.xlu0 %1619
      %1621 = vrot.lane.b32.xlu0 %v180, 92
      %v1622 = vpop.permute.xlu0 %1621
      %1623 = vrot.lane.b32.xlu0 %v173, 92
      %v1624 = vpop.permute.xlu0 %1623
      %1625 = vrot.lane.b32.xlu0 %v181, 92
      %v1626 = vpop.permute.xlu0 %1625
      %vm1627 = vcmask 752640
      %v1628 = vsel %vm1627, %v1620, %v1622
      %v1629 = vsel %vm1627, %v1622, %v1624
      %v1630 = vsel %vm1627, %v1624, %v1626
      %v1632 = vsel %vm194, %v1618, 0
      %v1634 = vsel %vm198, %v1628, 0
      %v1636 = vsel %vm198, %v1629, 0
      %v1638 = vsel %vm198, %v1630, 0
      %1640 = vmatprep.subr.mxu0 %v1636
      %1641 = vmatpush1.msra.mxu0 %v1634
      %1642 = vmatprep.subr.mxu0 0.0
      %1643 = vmatpush1.msra.mxu0 0.0
      %1644 = vmatprep.subr.mxu0 0.0
      %1645 = vmatpush1.msra.mxu0 0.0
      %1646 = vmatprep.subr.mxu0 0.0
      %1647 = vmatpush1.msra.mxu0 0.0
      %1648 = vmatprep.subr.mxu0 0.0
      %1649 = vmatpush1.msra.mxu0 0.0
      %1650 = vmatprep.subr.mxu0 0.0
      %1651 = vmatpush1.msra.mxu0 0.0
      %1652 = vmatprep.subr.mxu0 0.0
      %1653 = vmatpush1.msra.mxu0 0.0
      %1654 = vmatprep.subr.mxu0 0.0
      %1655 = vmatpush1.msra.mxu0 0.0
      %1656 = vmatprep.subr.mxu0 0.0
      %1657 = vmatpush1.msra.mxu0 0.0
      %1658 = vmatprep.subr.mxu0 0.0
      %1659 = vmatpush1.msra.mxu0 0.0
      %1660 = vmatprep.subr.mxu0 0.0
      %1661 = vmatpush1.msra.mxu0 0.0
      %1662 = vmatprep.subr.mxu0 0.0
      %1663 = vmatpush1.msra.mxu0 0.0
      %1664 = vmatprep.subr.mxu0 0.0
      %1665 = vmatpush1.msra.mxu0 0.0
      %1666 = vmatprep.subr.mxu0 0.0
      %1667 = vmatpush1.msra.mxu0 0.0
      %1668 = vmatprep.subr.mxu0 0.0
      %1669 = vmatpush1.msra.mxu0 0.0
      %1670 = vmatprep.subr.mxu0 0.0
      %1671 = vmatpush1.msra.mxu0 0.0
      %1672 = vmatprep.subr.mxu0 0.0
      %1673 = vmatpush1.msra.mxu0 0.0
      %1674 = vmatprep.subr.mxu0 0.0
      %1675 = vmatpush1.msra.mxu0 0.0
      %1676 = vmatprep.subr.mxu0 0.0
      %1677 = vmatpush1.msra.mxu0 0.0
      %1678 = vmatprep.subr.mxu0 0.0
      %1679 = vmatpush1.msra.mxu0 0.0
      %1680 = vmatprep.subr.mxu0 0.0
      %1681 = vmatpush1.msra.mxu0 0.0
      %1682 = vmatprep.subr.mxu0 0.0
      %1683 = vmatpush1.msra.mxu0 0.0
      %1684 = vmatprep.subr.mxu0 0.0
      %1685 = vmatpush1.msra.mxu0 0.0
      %1686 = vmatprep.subr.mxu0 0.0
      %1687 = vmatpush1.msra.mxu0 0.0
      %1688 = vmatprep.subr.mxu0 0.0
      %1689 = vmatpush1.msra.mxu0 0.0
      %1690 = vmatprep.subr.mxu0 0.0
      %1691 = vmatpush1.msra.mxu0 0.0
      %1692 = vmatprep.subr.mxu0 0.0
      %1693 = vmatpush1.msra.mxu0 0.0
      %1694 = vmatprep.subr.mxu0 0.0
      %1695 = vmatpush1.msra.mxu0 0.0
      %1696 = vmatprep.subr.mxu0 0.0
      %1697 = vmatpush1.msra.mxu0 0.0
      %1698 = vmatprep.subr.mxu0 0.0
      %1699 = vmatpush1.msra.mxu0 0.0
      %1700 = vmatprep.subr.mxu0 0.0
      %1701 = vmatpush1.msra.mxu0 0.0
      %1702 = vmatprep.subr.mxu0 0.0
      %1703 = vmatpush1.msra.mxu0 0.0
      %1704 = vmatprep.mubr.f32.mxu0 0.0
      %1705 = vmatmul.mubr.f32.gmra.mrb[0].mxu0 %v1632
      %v1706 = vpop.f32.mrb[0].mxu0
      %v1707 = vadd.f32 0.0, %v1706
      %v1708 = vpop.f32.mrb[0].mxu0
      %v1709 = vadd.f32 0.0, %v1708
      %1710 = vdwg.mxu0
      %1711 = vmatprep.subr.mxu0 0.0
      %1712 = vmatpush1.msra.mxu0 %v1638
      %1713 = vmatprep.subr.mxu0 0.0
      %1714 = vmatpush1.msra.mxu0 0.0
      %1715 = vmatprep.subr.mxu0 0.0
      %1716 = vmatpush1.msra.mxu0 0.0
      %1717 = vmatprep.subr.mxu0 0.0
      %1718 = vmatpush1.msra.mxu0 0.0
      %1719 = vmatprep.subr.mxu0 0.0
      %1720 = vmatpush1.msra.mxu0 0.0
      %1721 = vmatprep.subr.mxu0 0.0
      %1722 = vmatpush1.msra.mxu0 0.0
      %1723 = vmatprep.subr.mxu0 0.0
      %1724 = vmatpush1.msra.mxu0 0.0
      %1725 = vmatprep.subr.mxu0 0.0
      %1726 = vmatpush1.msra.mxu0 0.0
      %1727 = vmatprep.subr.mxu0 0.0
      %1728 = vmatpush1.msra.mxu0 0.0
      %1729 = vmatprep.subr.mxu0 0.0
      %1730 = vmatpush1.msra.mxu0 0.0
      %1731 = vmatprep.subr.mxu0 0.0
      %1732 = vmatpush1.msra.mxu0 0.0
      %1733 = vmatprep.subr.mxu0 0.0
      %1734 = vmatpush1.msra.mxu0 0.0
      %1735 = vmatprep.subr.mxu0 0.0
      %1736 = vmatpush1.msra.mxu0 0.0
      %1737 = vmatprep.subr.mxu0 0.0
      %1738 = vmatpush1.msra.mxu0 0.0
      %1739 = vmatprep.subr.mxu0 0.0
      %1740 = vmatpush1.msra.mxu0 0.0
      %1741 = vmatprep.subr.mxu0 0.0
      %1742 = vmatpush1.msra.mxu0 0.0
      %1743 = vmatprep.subr.mxu0 0.0
      %1744 = vmatpush1.msra.mxu0 0.0
      %1745 = vmatprep.subr.mxu0 0.0
      %1746 = vmatpush1.msra.mxu0 0.0
      %1747 = vmatprep.subr.mxu0 0.0
      %1748 = vmatpush1.msra.mxu0 0.0
      %1749 = vmatprep.subr.mxu0 0.0
      %1750 = vmatpush1.msra.mxu0 0.0
      %1751 = vmatprep.subr.mxu0 0.0
      %1752 = vmatpush1.msra.mxu0 0.0
      %1753 = vmatprep.subr.mxu0 0.0
      %1754 = vmatpush1.msra.mxu0 0.0
      %1755 = vmatprep.subr.mxu0 0.0
      %1756 = vmatpush1.msra.mxu0 0.0
      %1757 = vmatprep.subr.mxu0 0.0
      %1758 = vmatpush1.msra.mxu0 0.0
      %1759 = vmatprep.subr.mxu0 0.0
      %1760 = vmatpush1.msra.mxu0 0.0
      %1761 = vmatprep.subr.mxu0 0.0
      %1762 = vmatpush1.msra.mxu0 0.0
      %1763 = vmatprep.subr.mxu0 0.0
      %1764 = vmatpush1.msra.mxu0 0.0
      %1765 = vmatprep.subr.mxu0 0.0
      %1766 = vmatpush1.msra.mxu0 0.0
      %1767 = vmatprep.subr.mxu0 0.0
      %1768 = vmatpush1.msra.mxu0 0.0
      %1769 = vmatprep.subr.mxu0 0.0
      %1770 = vmatpush1.msra.mxu0 0.0
      %1771 = vmatprep.subr.mxu0 0.0
      %1772 = vmatpush1.msra.mxu0 0.0
      %1773 = vmatprep.subr.mxu0 0.0
      %1774 = vmatpush1.msra.mxu0 0.0
      %1775 = vmatprep.mubr.f32.mxu0 0.0
      %1776 = vmatmul.mubr.f32.gmra.mrb[0].mxu0 %v1632
      %v1777 = vpop.f32.mrb[0].mxu0
      %v1778 = vadd.f32 0.0, %v1777
      %v1779 = vpop.f32.mrb[0].mxu0
      %1780 = vdwg.mxu0
      %v1781 = vadd.f32 %v1614, %v1707
      %v1782 = vadd.f32 %v1615, %v1709
      %v1783 = vadd.f32 %v1616, %v1778
      %s1784 = scalar_lea.vmem %s1, 80
      %v1785 = vld [vmem:[%s1784] sm:$0xff]
      %1786 = vrot.lane.b32.xlu0 %v171, 91
      %v1787 = vpop.permute.xlu0 %1786
      %1788 = vrot.lane.b32.xlu0 %v180, 91
      %v1789 = vpop.permute.xlu0 %1788
      %1790 = vrot.lane.b32.xlu0 %v173, 91
      %v1791 = vpop.permute.xlu0 %1790
      %1792 = vrot.lane.b32.xlu0 %v181, 91
      %v1793 = vpop.permute.xlu0 %1792
      %vm1794 = vcmask 744448
      %v1795 = vsel %vm1794, %v1787, %v1789
      %v1796 = vsel %vm1794, %v1789, %v1791
      %v1797 = vsel %vm1794, %v1791, %v1793
      %v1799 = vsel %vm194, %v1785, 0
      %v1801 = vsel %vm198, %v1795, 0
      %v1803 = vsel %vm198, %v1796, 0
      %v1805 = vsel %vm198, %v1797, 0
      %1807 = vmatprep.subr.mxu0 %v1803
      %1808 = vmatpush1.msra.mxu0 %v1801
      %1809 = vmatprep.subr.mxu0 0.0
      %1810 = vmatpush1.msra.mxu0 0.0
      %1811 = vmatprep.subr.mxu0 0.0
      %1812 = vmatpush1.msra.mxu0 0.0
      %1813 = vmatprep.subr.mxu0 0.0
      %1814 = vmatpush1.msra.mxu0 0.0
      %1815 = vmatprep.subr.mxu0 0.0
      %1816 = vmatpush1.msra.mxu0 0.0
      %1817 = vmatprep.subr.mxu0 0.0
      %1818 = vmatpush1.msra.mxu0 0.0
      %1819 = vmatprep.subr.mxu0 0.0
      %1820 = vmatpush1.msra.mxu0 0.0
      %1821 = vmatprep.subr.mxu0 0.0
      %1822 = vmatpush1.msra.mxu0 0.0
      %1823 = vmatprep.subr.mxu0 0.0
      %1824 = vmatpush1.msra.mxu0 0.0
      %1825 = vmatprep.subr.mxu0 0.0
      %1826 = vmatpush1.msra.mxu0 0.0
      %1827 = vmatprep.subr.mxu0 0.0
      %1828 = vmatpush1.msra.mxu0 0.0
      %1829 = vmatprep.subr.mxu0 0.0
      %1830 = vmatpush1.msra.mxu0 0.0
      %1831 = vmatprep.subr.mxu0 0.0
      %1832 = vmatpush1.msra.mxu0 0.0
      %1833 = vmatprep.subr.mxu0 0.0
      %1834 = vmatpush1.msra.mxu0 0.0
      %1835 = vmatprep.subr.mxu0 0.0
      %1836 = vmatpush1.msra.mxu0 0.0
      %1837 = vmatprep.subr.mxu0 0.0
      %1838 = vmatpush1.msra.mxu0 0.0
      %1839 = vmatprep.subr.mxu0 0.0
      %1840 = vmatpush1.msra.mxu0 0.0
      %1841 = vmatprep.subr.mxu0 0.0
      %1842 = vmatpush1.msra.mxu0 0.0
      %1843 = vmatprep.subr.mxu0 0.0
      %1844 = vmatpush1.msra.mxu0 0.0
      %1845 = vmatprep.subr.mxu0 0.0
      %1846 = vmatpush1.msra.mxu0 0.0
      %1847 = vmatprep.subr.mxu0 0.0
      %1848 = vmatpush1.msra.mxu0 0.0
      %1849 = vmatprep.subr.mxu0 0.0
      %1850 = vmatpush1.msra.mxu0 0.0
      %1851 = vmatprep.subr.mxu0 0.0
      %1852 = vmatpush1.msra.mxu0 0.0
      %1853 = vmatprep.subr.mxu0 0.0
      %1854 = vmatpush1.msra.mxu0 0.0
      %1855 = vmatprep.subr.mxu0 0.0
      %1856 = vmatpush1.msra.mxu0 0.0
      %1857 = vmatprep.subr.mxu0 0.0
      %1858 = vmatpush1.msra.mxu0 0.0
      %1859 = vmatprep.subr.mxu0 0.0
      %1860 = vmatpush1.msra.mxu0 0.0
      %1861 = vmatprep.subr.mxu0 0.0
      %1862 = vmatpush1.msra.mxu0 0.0
      %1863 = vmatprep.subr.mxu0 0.0
      %1864 = vmatpush1.msra.mxu0 0.0
      %1865 = vmatprep.subr.mxu0 0.0
      %1866 = vmatpush1.msra.mxu0 0.0
      %1867 = vmatprep.subr.mxu0 0.0
      %1868 = vmatpush1.msra.mxu0 0.0
      %1869 = vmatprep.subr.mxu0 0.0
      %1870 = vmatpush1.msra.mxu0 0.0
      %1871 = vmatprep.mubr.f32.mxu0 0.0
      %1872 = vmatmul.mubr.f32.gmra.mrb[0].mxu0 %v1799
      %v1873 = vpop.f32.mrb[0].mxu0
      %v1874 = vadd.f32 0.0, %v1873
      %v1875 = vpop.f32.mrb[0].mxu0
      %v1876 = vadd.f32 0.0, %v1875
      %1877 = vdwg.mxu0
      %1878 = vmatprep.subr.mxu0 0.0
      %1879 = vmatpush1.msra.mxu0 %v1805
      %1880 = vmatprep.subr.mxu0 0.0
      %1881 = vmatpush1.msra.mxu0 0.0
      %1882 = vmatprep.subr.mxu0 0.0
      %1883 = vmatpush1.msra.mxu0 0.0
      %1884 = vmatprep.subr.mxu0 0.0
      %1885 = vmatpush1.msra.mxu0 0.0
      %1886 = vmatprep.subr.mxu0 0.0
      %1887 = vmatpush1.msra.mxu0 0.0
      %1888 = vmatprep.subr.mxu0 0.0
      %1889 = vmatpush1.msra.mxu0 0.0
      %1890 = vmatprep.subr.mxu0 0.0
      %1891 = vmatpush1.msra.mxu0 0.0
      %1892 = vmatprep.subr.mxu0 0.0
      %1893 = vmatpush1.msra.mxu0 0.0
      %1894 = vmatprep.subr.mxu0 0.0
      %1895 = vmatpush1.msra.mxu0 0.0
      %1896 = vmatprep.subr.mxu0 0.0
      %1897 = vmatpush1.msra.mxu0 0.0
      %1898 = vmatprep.subr.mxu0 0.0
      %1899 = vmatpush1.msra.mxu0 0.0
      %1900 = vmatprep.subr.mxu0 0.0
      %1901 = vmatpush1.msra.mxu0 0.0
      %1902 = vmatprep.subr.mxu0 0.0
      %1903 = vmatpush1.msra.mxu0 0.0
      %1904 = vmatprep.subr.mxu0 0.0
      %1905 = vmatpush1.msra.mxu0 0.0
      %1906 = vmatprep.subr.mxu0 0.0
      %1907 = vmatpush1.msra.mxu0 0.0
      %1908 = vmatprep.subr.mxu0 0.0
      %1909 = vmatpush1.msra.mxu0 0.0
      %1910 = vmatprep.subr.mxu0 0.0
      %1911 = vmatpush1.msra.mxu0 0.0
      %1912 = vmatprep.subr.mxu0 0.0
      %1913 = vmatpush1.msra.mxu0 0.0
      %1914 = vmatprep.subr.mxu0 0.0
      %1915 = vmatpush1.msra.mxu0 0.0
      %1916 = vmatprep.subr.mxu0 0.0
      %1917 = vmatpush1.msra.mxu0 0.0
      %1918 = vmatprep.subr.mxu0 0.0
      %1919 = vmatpush1.msra.mxu0 0.0
      %1920 = vmatprep.subr.mxu0 0.0
      %1921 = vmatpush1.msra.mxu0 0.0
      %1922 = vmatprep.subr.mxu0 0.0
      %1923 = vmatpush1.msra.mxu0 0.0
      %1924 = vmatprep.subr.mxu0 0.0
      %1925 = vmatpush1.msra.mxu0 0.0
      %1926 = vmatprep.subr.mxu0 0.0
      %1927 = vmatpush1.msra.mxu0 0.0
      %1928 = vmatprep.subr.mxu0 0.0
      %1929 = vmatpush1.msra.mxu0 0.0
      %1930 = vmatprep.subr.mxu0 0.0
      %1931 = vmatpush1.msra.mxu0 0.0
      %1932 = vmatprep.subr.mxu0 0.0
      %1933 = vmatpush1.msra.mxu0 0.0
      %1934 = vmatprep.subr.mxu0 0.0
      %1935 = vmatpush1.msra.mxu0 0.0
      %1936 = vmatprep.subr.mxu0 0.0
      %1937 = vmatpush1.msra.mxu0 0.0
      %1938 = vmatprep.subr.mxu0 0.0
      %1939 = vmatpush1.msra.mxu0 0.0
      %1940 = vmatprep.subr.mxu0 0.0
      %1941 = vmatpush1.msra.mxu0 0.0
      %1942 = vmatprep.mubr.f32.mxu0 0.0
      %1943 = vmatmul.mubr.f32.gmra.mrb[0].mxu0 %v1799
      %v1944 = vpop.f32.mrb[0].mxu0
      %v1945 = vadd.f32 0.0, %v1944
      %v1946 = vpop.f32.mrb[0].mxu0
      %1947 = vdwg.mxu0
      %v1948 = vadd.f32 %v1781, %v1874
      %v1949 = vadd.f32 %v1782, %v1876
      %v1950 = vadd.f32 %v1783, %v1945
      %s1951 = scalar_lea.vmem %s1, 88
      %v1952 = vld [vmem:[%s1951] sm:$0xff]
      %1953 = vrot.lane.b32.xlu0 %v171, 90
      %v1954 = vpop.permute.xlu0 %1953
      %1955 = vrot.lane.b32.xlu0 %v180, 90
      %v1956 = vpop.permute.xlu0 %1955
      %1957 = vrot.lane.b32.xlu0 %v173, 90
      %v1958 = vpop.permute.xlu0 %1957
      %1959 = vrot.lane.b32.xlu0 %v181, 90
      %v1960 = vpop.permute.xlu0 %1959
      %vm1961 = vcmask 736256
      %v1962 = vsel %vm1961, %v1954, %v1956
      %v1963 = vsel %vm1961, %v1956, %v1958
      %v1964 = vsel %vm1961, %v1958, %v1960
      %v1966 = vsel %vm194, %v1952, 0
      %v1968 = vsel %vm198, %v1962, 0
      %v1970 = vsel %vm198, %v1963, 0
      %v1972 = vsel %vm198, %v1964, 0
      %1974 = vmatprep.subr.mxu0 %v1970
      %1975 = vmatpush1.msra.mxu0 %v1968
      %1976 = vmatprep.subr.mxu0 0.0
      %1977 = vmatpush1.msra.mxu0 0.0
      %1978 = vmatprep.subr.mxu0 0.0
      %1979 = vmatpush1.msra.mxu0 0.0
      %1980 = vmatprep.subr.mxu0 0.0
      %1981 = vmatpush1.msra.mxu0 0.0
      %1982 = vmatprep.subr.mxu0 0.0
      %1983 = vmatpush1.msra.mxu0 0.0
      %1984 = vmatprep.subr.mxu0 0.0
      %1985 = vmatpush1.msra.mxu0 0.0
      %1986 = vmatprep.subr.mxu0 0.0
      %1987 = vmatpush1.msra.mxu0 0.0
      %1988 = vmatprep.subr.mxu0 0.0
      %1989 = vmatpush1.msra.mxu0 0.0
      %1990 = vmatprep.subr.mxu0 0.0
      %1991 = vmatpush1.msra.mxu0 0.0
      %1992 = vmatprep.subr.mxu0 0.0
      %1993 = vmatpush1.msra.mxu0 0.0
      %1994 = vmatprep.subr.mxu0 0.0
      %1995 = vmatpush1.msra.mxu0 0.0
      %1996 = vmatprep.subr.mxu0 0.0
      %1997 = vmatpush1.msra.mxu0 0.0
      %1998 = vmatprep.subr.mxu0 0.0
      %1999 = vmatpush1.msra.mxu0 0.0
      %2000 = vmatprep.subr.mxu0 0.0
      %2001 = vmatpush1.msra.mxu0 0.0
      %2002 = vmatprep.subr.mxu0 0.0
      %2003 = vmatpush1.msra.mxu0 0.0
      %2004 = vmatprep.subr.mxu0 0.0
      %2005 = vmatpush1.msra.mxu0 0.0
      %2006 = vmatprep.subr.mxu0 0.0
      %2007 = vmatpush1.msra.mxu0 0.0
      %2008 = vmatprep.subr.mxu0 0.0
      %2009 = vmatpush1.msra.mxu0 0.0
      %2010 = vmatprep.subr.mxu0 0.0
      %2011 = vmatpush1.msra.mxu0 0.0
      %2012 = vmatprep.subr.mxu0 0.0
      %2013 = vmatpush1.msra.mxu0 0.0
      %2014 = vmatprep.subr.mxu0 0.0
      %2015 = vmatpush1.msra.mxu0 0.0
      %2016 = vmatprep.subr.mxu0 0.0
      %2017 = vmatpush1.msra.mxu0 0.0
      %2018 = vmatprep.subr.mxu0 0.0
      %2019 = vmatpush1.msra.mxu0 0.0
      %2020 = vmatprep.subr.mxu0 0.0
      %2021 = vmatpush1.msra.mxu0 0.0
      %2022 = vmatprep.subr.mxu0 0.0
      %2023 = vmatpush1.msra.mxu0 0.0
      %2024 = vmatprep.subr.mxu0 0.0
      %2025 = vmatpush1.msra.mxu0 0.0
      %2026 = vmatprep.subr.mxu0 0.0
      %2027 = vmatpush1.msra.mxu0 0.0
      %2028 = vmatprep.subr.mxu0 0.0
      %2029 = vmatpush1.msra.mxu0 0.0
      %2030 = vmatprep.subr.mxu0 0.0
      %2031 = vmatpush1.msra.mxu0 0.0
      %2032 = vmatprep.subr.mxu0 0.0
      %2033 = vmatpush1.msra.mxu0 0.0
      %2034 = vmatprep.subr.mxu0 0.0
      %2035 = vmatpush1.msra.mxu0 0.0
      %2036 = vmatprep.subr.mxu0 0.0
      %2037 = vmatpush1.msra.mxu0 0.0
      %2038 = vmatprep.mubr.f32.mxu0 0.0
      %2039 = vmatmul.mubr.f32.gmra.mrb[0].mxu0 %v1966
      %v2040 = vpop.f32.mrb[0].mxu0
      %v2041 = vadd.f32 0.0, %v2040
      %v2042 = vpop.f32.mrb[0].mxu0
      %v2043 = vadd.f32 0.0, %v2042
      %2044 = vdwg.mxu0
      %2045 = vmatprep.subr.mxu0 0.0
      %2046 = vmatpush1.msra.mxu0 %v1972
      %2047 = vmatprep.subr.mxu0 0.0
      %2048 = vmatpush1.msra.mxu0 0.0
      %2049 = vmatprep.subr.mxu0 0.0
      %2050 = vmatpush1.msra.mxu0 0.0
      %2051 = vmatprep.subr.mxu0 0.0
      %2052 = vmatpush1.msra.mxu0 0.0
      %2053 = vmatprep.subr.mxu0 0.0
      %2054 = vmatpush1.msra.mxu0 0.0
      %2055 = vmatprep.subr.mxu0 0.0
      %2056 = vmatpush1.msra.mxu0 0.0
      %2057 = vmatprep.subr.mxu0 0.0
      %2058 = vmatpush1.msra.mxu0 0.0
      %2059 = vmatprep.subr.mxu0 0.0
      %2060 = vmatpush1.msra.mxu0 0.0
      %2061 = vmatprep.subr.mxu0 0.0
      %2062 = vmatpush1.msra.mxu0 0.0
      %2063 = vmatprep.subr.mxu0 0.0
      %2064 = vmatpush1.msra.mxu0 0.0
      %2065 = vmatprep.subr.mxu0 0.0
      %2066 = vmatpush1.msra.mxu0 0.0
      %2067 = vmatprep.subr.mxu0 0.0
      %2068 = vmatpush1.msra.mxu0 0.0
      %2069 = vmatprep.subr.mxu0 0.0
      %2070 = vmatpush1.msra.mxu0 0.0
      %2071 = vmatprep.subr.mxu0 0.0
      %2072 = vmatpush1.msra.mxu0 0.0
      %2073 = vmatprep.subr.mxu0 0.0
      %2074 = vmatpush1.msra.mxu0 0.0
      %2075 = vmatprep.subr.mxu0 0.0
      %2076 = vmatpush1.msra.mxu0 0.0
      %2077 = vmatprep.subr.mxu0 0.0
      %2078 = vmatpush1.msra.mxu0 0.0
      %2079 = vmatprep.subr.mxu0 0.0
      %2080 = vmatpush1.msra.mxu0 0.0
      %2081 = vmatprep.subr.mxu0 0.0
      %2082 = vmatpush1.msra.mxu0 0.0
      %2083 = vmatprep.subr.mxu0 0.0
      %2084 = vmatpush1.msra.mxu0 0.0
      %2085 = vmatprep.subr.mxu0 0.0
      %2086 = vmatpush1.msra.mxu0 0.0
      %2087 = vmatprep.subr.mxu0 0.0
      %2088 = vmatpush1.msra.mxu0 0.0
      %2089 = vmatprep.subr.mxu0 0.0
      %2090 = vmatpush1.msra.mxu0 0.0
      %2091 = vmatprep.subr.mxu0 0.0
      %2092 = vmatpush1.msra.mxu0 0.0
      %2093 = vmatprep.subr.mxu0 0.0
      %2094 = vmatpush1.msra.mxu0 0.0
      %2095 = vmatprep.subr.mxu0 0.0
      %2096 = vmatpush1.msra.mxu0 0.0
      %2097 = vmatprep.subr.mxu0 0.0
      %2098 = vmatpush1.msra.mxu0 0.0
      %2099 = vmatprep.subr.mxu0 0.0
      %2100 = vmatpush1.msra.mxu0 0.0
      %2101 = vmatprep.subr.mxu0 0.0
      %2102 = vmatpush1.msra.mxu0 0.0
      %2103 = vmatprep.subr.mxu0 0.0
      %2104 = vmatpush1.msra.mxu0 0.0
      %2105 = vmatprep.subr.mxu0 0.0
      %2106 = vmatpush1.msra.mxu0 0.0
      %2107 = vmatprep.subr.mxu0 0.0
      %2108 = vmatpush1.msra.mxu0 0.0
      %2109 = vmatprep.mubr.f32.mxu0 0.0
      %2110 = vmatmul.mubr.f32.gmra.mrb[0].mxu0 %v1966
      %v2111 = vpop.f32.mrb[0].mxu0
      %v2112 = vadd.f32 0.0, %v2111
      %v2113 = vpop.f32.mrb[0].mxu0
      %2114 = vdwg.mxu0
      %v2115 = vadd.f32 %v1948, %v2041
      %v2116 = vadd.f32 %v1949, %v2043
      %v2117 = vadd.f32 %v1950, %v2112
      %v2118 = vadd.f32 %v2115, %v1168
      %v2119 = vadd.f32 %v2116, %v1168
      %v2120 = vadd.f32 %v2117, %v1168
      %2121 = vst [vmem:[%s170 + $0x18] sm:$0xff] %v2118
      %2122 = vst [vmem:[%s170 + $0x20] sm:$0xff] %v2119
      %2123 = vst [vmem:[%s170 + $0x28] sm:$0xff] %v2120
      %p2124 = scmp.lt.s32.totalorder %s14, 1
      %s2125 = scalar_select %p2124, %s14, 1
      %s2126 = smul.addr %s2125, 6
      %s2127 = smul.addr %s2126, 8
      %s2128 = scalar_lea.vmem %s3, %s2127
      // Predicated region
      $region33: #{apply.1} parent=31 // pred_check
        %p2129 = pneg %p100
      $region34: #{apply.1} parent=31 // pred_check_branch
        %2131 = sbr.rel (%p2129) target = $region36
      $region35: #{apply.1} parent=31 // pred_region
        _
      $region36: #{apply.1} parent=31 // pred_fallthru
        _
    $region32: #{apply.1} parent=5 // pred_fallthru
      _
    %p2132 = scmp.le.s32.totalorder 2, %s9
    // Predicated region
    $region37: #{apply.1} parent=5 // pred_check
      %p2133 = pneg %p2132
    $region38: #{apply.1} parent=5 // pred_check_branch
      %2135 = sbr.rel (%p2133) target = $region40
    $region39: #{apply.1} parent=5 // pred_region
      %s2136 = ssub.s32 %s9, 2
      // Predicated region
      $region41: #{apply.1} parent=39 // pred_check
        %p2137 = pneg %p106
      $region42: #{apply.1} parent=39 // pred_check_branch
        %2139 = sbr.rel (%p2137) target = $region44
      $region43: #{apply.1} parent=39 // pred_region
        %p2140 = scmp.lt.s32.totalorder %s15, 1
        %s2141 = scalar_select %p2140, %s15, 1
        %s2142 = smul.addr %s2141, 6
        %s2143 = smul.addr %s2142, 8
        %s2144 = scalar_lea.vmem %s3, %s2143
      $region44: #{apply.1} parent=39 // pred_fallthru
        _
    $region40: #{apply.1} parent=5 // pred_fallthru
      _
  $region6: #{apply.1} parent=0 // loop_footer
    %s13 = sadd.s32 1, %s9
  $region7: #{apply.1} parent=0 // loop_footer_branch
    %8 = sbr.rel target = $region3
  $region8: #{apply.1} parent=0 // loop_exit
    _

</llo_original>
